<compile_context>
chip_gen: v7x
topology: tpu7x:2x2x1
jax: 0.10.0
libtpu: 0.0.40
codegen_flags: <defaults>
</compile_context>

<pallas_src>
import functools

import jax
import jax.numpy as jnp
from jax import lax
from jax.experimental import pallas as pl
from jax.experimental.pallas import tpu as pltpu


def _round_up(x, m):
    return (x + m - 1) // m * m


def _make_kernel(W, HW, HWp, Cin, Cpad, TCO, scratch_dtype):
    """4-phase sub-pixel transposed-conv kernel; one (batch, cout-tile) step."""

    def kernel(x_ref, w_ref, b_ref, m_ref, o_ref, rhs_ref):
        # x_ref  : (1, Cin, HWp)     f32  flattened input row (constant over co)
        # w_ref  : (4, TCO, 4*Cpad)  bf16 per-phase K-stacked weights
        # b_ref  : (TCO, 1)          f32  bias tile
        # m_ref  : (9, HWp)          f32  (du, dv) boundary-validity masks
        # o_ref  : (1, 4, TCO, HWp)  f32  per-phase lane-dense outputs
        # rhs_ref: (4, 4*Cpad, HWp)  scratch: per-phase stacked taps (K axis)
        co = pl.program_id(1)

        # ---- build the stacked per-phase RHS once per batch element --------
        @pl.when(co == 0)
        def _build_rhs():
            if Cpad != Cin:
                # Zero the K-padding rows once so zero weights never meet
                # stale (possibly NaN) VMEM contents.
                for f in range(4):
                    rhs_ref[f] = jnp.zeros((4 * Cpad, HWp), scratch_dtype)
            x = x_ref[0]                                      # (Cin, HWp) f32
            # 9 distinct shifted+masked taps, computed once (pltpu.roll on the
            # XLU + one f32 mask multiply), then scattered into the 16 K-slots.
            taps = {}
            for du in (-1, 0, 1):
                for dv in (-1, 0, 1):
                    off = du * W + dv
                    t9 = (du + 1) * 3 + (dv + 1)
                    v = pltpu.roll(x, shift=(-off) % HWp, axis=1) if off else x
                    if off or HWp != HW:
                        v = v * m_ref[t9:t9 + 1, :]           # f32 mask (v5e-safe)
                    taps[(du, dv)] = v.astype(scratch_dtype)
            for py in range(2):
                for px in range(2):
                    f = 2 * py + px
                    for a in range(2):
                        for c in range(2):
                            t = 2 * a + c
                            rhs_ref[f, t * Cpad:t * Cpad + Cin, :] = (
                                taps[(py + a - 1, px + c - 1)])

        # ---- hot loop: one MXU dot per phase, bias + ReLU fused on f32 acc --
        bias_hw = jnp.broadcast_to(b_ref[...], (TCO, HWp))    # hoisted once
        for f in range(4):
            rhs = rhs_ref[f]
            if scratch_dtype != jnp.bfloat16:
                rhs = rhs.astype(jnp.bfloat16)                # bf16 MXU operands
            acc = jnp.dot(w_ref[f], rhs, preferred_element_type=jnp.float32)
            o_ref[0, f] = jnp.maximum(acc + bias_hw, 0.0).astype(o_ref.dtype)

    return kernel


def trans_conv2d_block_forward(x_nchw, weight, bias, *, stride, padding,
                               cout_tile=None):
    """Forward of TransConv2dBlock(norm='none', activation='relu').

    x_nchw : (B, Cin, H, W) float32
    weight : (Cin, Cout, kH, kW) float32   (PyTorch ConvTranspose2d layout)
    bias   : (Cout,) float32
    Returns (B, Cout, 2H, 2W) float32.
    """
    B, Cin, H, W = x_nchw.shape
    Cin2, Cout, kH, kW = weight.shape
    assert Cin == Cin2
    assert (kH, kW, stride, padding) == (4, 4, 2, 1), (
        "phase-decomposed kernel implemented for kernel_size=4, stride=2, "
        "padding=1 (the TransConv2dBlock 2x upsampling config)")
    HW = H * W
    HWp = _round_up(HW, 128)               # lane-dense output guard

    # K-slot size per tap: bf16 scratch when Cin is 16-aligned, otherwise an
    # f32 scratch with each tap padded to 8 rows (pad rows get zero weights),
    # so every tap store lands on an aligned sublane tile; taps are cast to
    # bf16 at dot time in the f32-scratch case.
    if Cin % 16 == 0:
        Cpad, scratch_dtype = Cin, jnp.bfloat16
    else:
        Cpad, scratch_dtype = _round_up(Cin, 8), jnp.float32

    TCO = cout_tile if cout_tile is not None else min(Cout, 128)
    assert Cout % TCO == 0 and (TCO % 8 == 0 or TCO == Cout)
    n_co = Cout // TCO

    # ---- cheap host/XLA-side prep (O(weight) + tiny masks) ------------------
    # Per-phase K-stacked weight table:
    #   w_tab[f, co, t*Cpad + ci] = weight[ci, co, 3 - py - 2a, 3 - px - 2c],
    #   f = 2*py + px, t = 2*a + c   (padding rows stay zero).
    w_tab = jnp.zeros((4, Cout, 4 * Cpad), jnp.float32)
    for py in range(2):
        for px in range(2):
            f = 2 * py + px
            for a in range(2):
                for c in range(2):
                    t = 2 * a + c
                    blk = jnp.transpose(weight[:, :, 3 - py - 2 * a,
                                               3 - px - 2 * c])  # (Cout, Cin)
                    w_tab = w_tab.at[f, :, t * Cpad:t * Cpad + Cin].set(blk)
    w_tab = w_tab.astype(jnp.bfloat16)

    # Boundary-validity masks for every (du, dv) tap of the rolled flat input.
    pos = jnp.arange(HWp, dtype=jnp.int32)
    ry, rx = pos // W, pos % W
    rows = []
    for du in (-1, 0, 1):
        for dv in (-1, 0, 1):
            rows.append((ry + du >= 0) & (ry + du < H) &
                        (rx + dv >= 0) & (rx + dv < W) & (pos < HW))
    masks = jnp.stack(rows).astype(jnp.float32)                  # (9, HWp)

    bias2d = bias.reshape(Cout, 1).astype(jnp.float32)

    # Raw flattened input -- no zero-padded activation copy; boundaries are
    # fully handled by the masks.  (The lane pad below only triggers when
    # H*W is not already a multiple of 128.)
    x_flat = x_nchw.reshape(B, Cin, HW).astype(jnp.float32)
    if HWp != HW:
        x_flat = jnp.pad(x_flat, ((0, 0), (0, 0), (0, HWp - HW)))

    # Honest per-step VMEM estimate (pipeline double-buffers in/out blocks).
    est = (2 * Cin * HWp * 4
           + 2 * 4 * TCO * 4 * Cpad * 2
           + 2 * (TCO * 4 + 9 * HWp * 4)
           + 2 * 4 * TCO * HWp * 4
           + 4 * 4 * Cpad * HWp * jnp.dtype(scratch_dtype).itemsize)
    vmem_limit = int(min(64 * 1024 * 1024, max(32 * 1024 * 1024, 2 * est)))

    # NOTE: w_tab / bias2d / masks are grid-invariant (constant index_map), so
    # the pipeline never re-DMAs them; where available, pipeline_mode=
    # pl.Buffered(1) on those specs would additionally drop their second VMEM
    # buffer for very large channel counts.
    out_ph = pl.pallas_call(
        _make_kernel(W, HW, HWp, Cin, Cpad, TCO, scratch_dtype),
        out_shape=jax.ShapeDtypeStruct((B, 4, Cout, HWp), jnp.float32),
        grid_spec=pltpu.PrefetchScalarGridSpec(
            num_scalar_prefetch=0,
            # Cout tile axis fastest-varying: >1 pipeline step even at tiny B,
            # and the input block is reused (no re-DMA) across Cout tiles.
            grid=(B, n_co),
            in_specs=[
                pl.BlockSpec((1, Cin, HWp), lambda b, j: (b, 0, 0)),
                pl.BlockSpec((4, TCO, 4 * Cpad), lambda b, j: (0, j, 0)),
                pl.BlockSpec((TCO, 1), lambda b, j: (j, 0)),
                pl.BlockSpec((9, HWp), lambda b, j: (0, 0)),
            ],
            out_specs=pl.BlockSpec((1, 4, TCO, HWp),
                                   lambda b, j: (b, 0, j, 0)),
            scratch_shapes=[pltpu.VMEM((4, 4 * Cpad, HWp), scratch_dtype)],
        ),
        compiler_params=pltpu.CompilerParams(
            dimension_semantics=("parallel", "arbitrary"),
            vmem_limit_bytes=vmem_limit),
    )(x_flat, w_tab, bias2d, masks)

    # Depth-to-space epilogue: (b, py, px, co, ry, rx) -> (b, co, 2ry+py, 2rx+px).
    # TODO(synk): still one XLA pass over the (4x-sized) output; with a bf16
    # output it could be folded into the kernel by packing the px=0/px=1 phases
    # into u32 lanes (pltpu.bitcast), or fused into the consumer.
    if HWp != HW:
        out_ph = out_ph[..., :HW]
    out = out_ph.reshape(B, 2, 2, Cout, H, W)
    out = jnp.transpose(out, (0, 3, 4, 1, 5, 2)).reshape(B, Cout, 2 * H, 2 * W)
    # TODO(synk): norm branches ('bn'/'in'/'ln'/'adain') of TransConv2dBlock are
    # not implemented (module default norm='none'); only ReLU is fused.
    # TODO(synk): very large Cin*H*W also wants an HW tile axis (with tap halos)
    # to stay inside v7x's 64 MiB VMEM -- see the budget estimate above.
    return out


def _reference_forward(x_nchw, weight, bias, *, stride, padding):
    """Independent reference via XLA's dilated convolution."""
    k = weight.shape[2]
    wf = weight[:, :, ::-1, ::-1]                        # (Cin, Cout, kH, kW)
    w_oihw = jnp.transpose(wf, (1, 0, 2, 3))             # (Cout, Cin, kH, kW)
    pad = k - 1 - padding
    y = lax.conv_general_dilated(
        x_nchw, w_oihw,
        window_strides=(1, 1),
        padding=[(pad, pad), (pad, pad)],
        lhs_dilation=(stride, stride),
        dimension_numbers=("NCHW", "OIHW", "NCHW"),
    )
    y = y + bias.reshape(1, -1, 1, 1)
    return jnp.maximum(y, 0.0)


if __name__ == "__main__":
    # TransConv2dBlock(input_dim=4, output_dim=16, kernel_size=4, stride=2,
    #                  padding=1, norm='none', activation='relu')
    B, Cin, H, W = 2, 4, 16, 16
    Cout, k, s, p = 16, 4, 2, 1

    key = jax.random.PRNGKey(0)
    kx, kw_, kb = jax.random.split(key, 3)
    x = jax.random.normal(kx, (B, Cin, H, W), dtype=jnp.float32)
    weight = jax.random.normal(kw_, (Cin, Cout, k, k), dtype=jnp.float32) * 0.1
    bias = jax.random.normal(kb, (Cout,), dtype=jnp.float32) * 0.1

    # cout_tile=8 -> grid=(B, 2): exercises the cached-RHS reuse across Cout
    # tiles and gives the pipeline more than one step per batch element.
    fwd = jax.jit(functools.partial(trans_conv2d_block_forward,
                                    stride=s, padding=p, cout_tile=8))
    out = jax.block_until_ready(fwd(x, weight, bias))

    ref = jax.block_until_ready(
        _reference_forward(x, weight, bias, stride=s, padding=p))

    assert out.shape == (B, Cout, 2 * H, 2 * W)
    # bf16 MXU operands (f32 accumulation) vs an all-f32 reference: operand
    # rounding is ~2^-8 relative, so the tolerance is loosened accordingly.
    assert jnp.allclose(out, ref, atol=3e-2, rtol=3e-2), "mismatch vs reference"
    print("KERNEL_OK")
</pallas_src>

<mosaic_0001>
module attributes {stable_mosaic.version = 11 : i64} {
  func.func @kernel(%arg0: i32, %arg1: i32, %arg2: memref<1x4x256xf32, #tpu.memory_space<vmem>>, %arg3: memref<4x8x32xbf16, #tpu.memory_space<vmem>>, %arg4: memref<8x1xf32, #tpu.memory_space<vmem>>, %arg5: memref<9x256xf32, #tpu.memory_space<vmem>>, %arg6: memref<1x4x8x256xf32, #tpu.memory_space<vmem>>, %arg7: memref<4x32x256xf32, #tpu.memory_space<vmem>>) attributes {dimension_semantics = [#tpu.dimension_semantics<parallel>, #tpu.dimension_semantics<arbitrary>], iteration_bounds = array<i64: 2, 2>, scalar_prefetch = 0 : i64, scratch_operands = 1 : i64, tpu.core_type = #tpu.core_type<tc>, window_params = [{transform_indices = @transform_0, window_bounds = array<i64: 1, 4, 256>}, {transform_indices = @transform_1, window_bounds = array<i64: 4, 8, 32>}, {transform_indices = @transform_2, window_bounds = array<i64: 8, 1>}, {pipeline_mode = #tpu.pipeline_mode<synchronous>, transform_indices = @transform_3, window_bounds = array<i64: 9, 256>}, {transform_indices = @transform_4, window_bounds = array<i64: 1, 4, 8, 256>}]} {
    %c0_i32 = arith.constant 0 : i32
    %0 = arith.cmpi eq, %arg1, %c0_i32 : i32
    %1 = arith.extui %0 : i1 to i32
    %c0_i32_0 = arith.constant 0 : i32
    %2 = arith.cmpi ne, %1, %c0_i32_0 : i32
    scf.if %2 {
      %cst_46 = arith.constant 0.000000e+00 : f32
      %54 = vector.broadcast %cst_46 : f32 to vector<32x256xf32>
      %c0_47 = arith.constant 0 : index
      %c0_48 = arith.constant 0 : index
      %c0_49 = arith.constant 0 : index
      %55 = vector.load %arg7[%c0_47, %c0_48, %c0_49] : memref<4x32x256xf32, #tpu.memory_space<vmem>>, vector<1x32x256xf32>
      %56 = vector.shape_cast %55 : vector<1x32x256xf32> to vector<32x256xf32>
      %57 = vector.shape_cast %54 : vector<32x256xf32> to vector<1x32x256xf32>
      tpu.vector_store %arg7[%c0_47, %c0_48, %c0_49], %57 {strides = array<i32>} : memref<4x32x256xf32, #tpu.memory_space<vmem>>, vector<1x32x256xf32>,
      %cst_50 = arith.constant 0.000000e+00 : f32
      %58 = vector.broadcast %cst_50 : f32 to vector<32x256xf32>
      %c1_51 = arith.constant 1 : index
      %c0_52 = arith.constant 0 : index
      %c0_53 = arith.constant 0 : index
      %59 = vector.load %arg7[%c1_51, %c0_52, %c0_53] : memref<4x32x256xf32, #tpu.memory_space<vmem>>, vector<1x32x256xf32>
      %60 = vector.shape_cast %59 : vector<1x32x256xf32> to vector<32x256xf32>
      %61 = vector.shape_cast %58 : vector<32x256xf32> to vector<1x32x256xf32>
      tpu.vector_store %arg7[%c1_51, %c0_52, %c0_53], %61 {strides = array<i32>} : memref<4x32x256xf32, #tpu.memory_space<vmem>>, vector<1x32x256xf32>,
      %cst_54 = arith.constant 0.000000e+00 : f32
      %62 = vector.broadcast %cst_54 : f32 to vector<32x256xf32>
      %c2_55 = arith.constant 2 : index
      %c0_56 = arith.constant 0 : index
      %c0_57 = arith.constant 0 : index
      %63 = vector.load %arg7[%c2_55, %c0_56, %c0_57] : memref<4x32x256xf32, #tpu.memory_space<vmem>>, vector<1x32x256xf32>
      %64 = vector.shape_cast %63 : vector<1x32x256xf32> to vector<32x256xf32>
      %65 = vector.shape_cast %62 : vector<32x256xf32> to vector<1x32x256xf32>
      tpu.vector_store %arg7[%c2_55, %c0_56, %c0_57], %65 {strides = array<i32>} : memref<4x32x256xf32, #tpu.memory_space<vmem>>, vector<1x32x256xf32>,
      %cst_58 = arith.constant 0.000000e+00 : f32
      %66 = vector.broadcast %cst_58 : f32 to vector<32x256xf32>
      %c3_59 = arith.constant 3 : index
      %c0_60 = arith.constant 0 : index
      %c0_61 = arith.constant 0 : index
      %67 = vector.load %arg7[%c3_59, %c0_60, %c0_61] : memref<4x32x256xf32, #tpu.memory_space<vmem>>, vector<1x32x256xf32>
      %68 = vector.shape_cast %67 : vector<1x32x256xf32> to vector<32x256xf32>
      %69 = vector.shape_cast %66 : vector<32x256xf32> to vector<1x32x256xf32>
      tpu.vector_store %arg7[%c3_59, %c0_60, %c0_61], %69 {strides = array<i32>} : memref<4x32x256xf32, #tpu.memory_space<vmem>>, vector<1x32x256xf32>,
      %c0_62 = arith.constant 0 : index
      %c0_63 = arith.constant 0 : index
      %c0_64 = arith.constant 0 : index
      %70 = vector.load %arg2[%c0_62, %c0_63, %c0_64] : memref<1x4x256xf32, #tpu.memory_space<vmem>>, vector<1x4x256xf32>
      %71 = vector.shape_cast %70 : vector<1x4x256xf32> to vector<4x256xf32>
      %c17_i32 = arith.constant 17 : i32
      %72 = tpu.dynamic_rotate %71 by %c17_i32 dim 1 : vector<4x256xf32>, i32 -> vector<4x256xf32>
      %c0_65 = arith.constant 0 : index
      %c0_66 = arith.constant 0 : index
      %73 = vector.load %arg5[%c0_65, %c0_66] : memref<9x256xf32, #tpu.memory_space<vmem>>, vector<1x256xf32>
      %74 = vector.broadcast %73 : vector<1x256xf32> to vector<4x256xf32>
      %75 = arith.mulf %72, %74 : vector<4x256xf32>
      %c16_i32 = arith.constant 16 : i32
      %76 = tpu.dynamic_rotate %71 by %c16_i32 dim 1 : vector<4x256xf32>, i32 -> vector<4x256xf32>
      %c1_67 = arith.constant 1 : index
      %c0_68 = arith.constant 0 : index
      %77 = vector.load %arg5[%c1_67, %c0_68] : memref<9x256xf32, #tpu.memory_space<vmem>>, vector<1x256xf32>
      %78 = vector.broadcast %77 : vector<1x256xf32> to vector<4x256xf32>
      %79 = arith.mulf %76, %78 : vector<4x256xf32>
      %c15_i32 = arith.constant 15 : i32
      %80 = tpu.dynamic_rotate %71 by %c15_i32 dim 1 : vector<4x256xf32>, i32 -> vector<4x256xf32>
      %c2_69 = arith.constant 2 : index
      %c0_70 = arith.constant 0 : index
      %81 = vector.load %arg5[%c2_69, %c0_70] : memref<9x256xf32, #tpu.memory_space<vmem>>, vector<1x256xf32>
      %82 = vector.broadcast %81 : vector<1x256xf32> to vector<4x256xf32>
      %83 = arith.mulf %80, %82 : vector<4x256xf32>
      %c1_i32 = arith.constant 1 : i32
      %84 = tpu.dynamic_rotate %71 by %c1_i32 dim 1 : vector<4x256xf32>, i32 -> vector<4x256xf32>
      %c3_71 = arith.constant 3 : index
      %c0_72 = arith.constant 0 : index
      %85 = vector.load %arg5[%c3_71, %c0_72] : memref<9x256xf32, #tpu.memory_space<vmem>>, vector<1x256xf32>
      %86 = vector.broadcast %85 : vector<1x256xf32> to vector<4x256xf32>
      %87 = arith.mulf %84, %86 : vector<4x256xf32>
      %c255_i32 = arith.constant 255 : i32
      %88 = tpu.dynamic_rotate %71 by %c255_i32 dim 1 : vector<4x256xf32>, i32 -> vector<4x256xf32>
      %c5 = arith.constant 5 : index
      %c0_73 = arith.constant 0 : index
      %89 = vector.load %arg5[%c5, %c0_73] : memref<9x256xf32, #tpu.memory_space<vmem>>, vector<1x256xf32>
      %90 = vector.broadcast %89 : vector<1x256xf32> to vector<4x256xf32>
      %91 = arith.mulf %88, %90 : vector<4x256xf32>
      %c241_i32 = arith.constant 241 : i32
      %92 = tpu.dynamic_rotate %71 by %c241_i32 dim 1 : vector<4x256xf32>, i32 -> vector<4x256xf32>
      %c6 = arith.constant 6 : index
      %c0_74 = arith.constant 0 : index
      %93 = vector.load %arg5[%c6, %c0_74] : memref<9x256xf32, #tpu.memory_space<vmem>>, vector<1x256xf32>
      %94 = vector.broadcast %93 : vector<1x256xf32> to vector<4x256xf32>
      %95 = arith.mulf %92, %94 : vector<4x256xf32>
      %c240_i32 = arith.constant 240 : i32
      %96 = tpu.dynamic_rotate %71 by %c240_i32 dim 1 : vector<4x256xf32>, i32 -> vector<4x256xf32>
      %c7 = arith.constant 7 : index
      %c0_75 = arith.constant 0 : index
      %97 = vector.load %arg5[%c7, %c0_75] : memref<9x256xf32, #tpu.memory_space<vmem>>, vector<1x256xf32>
      %98 = vector.broadcast %97 : vector<1x256xf32> to vector<4x256xf32>
      %99 = arith.mulf %96, %98 : vector<4x256xf32>
      %c239_i32 = arith.constant 239 : i32
      %100 = tpu.dynamic_rotate %71 by %c239_i32 dim 1 : vector<4x256xf32>, i32 -> vector<4x256xf32>
      %c8 = arith.constant 8 : index
      %c0_76 = arith.constant 0 : index
      %101 = vector.load %arg5[%c8, %c0_76] : memref<9x256xf32, #tpu.memory_space<vmem>>, vector<1x256xf32>
      %102 = vector.broadcast %101 : vector<1x256xf32> to vector<4x256xf32>
      %103 = arith.mulf %100, %102 : vector<4x256xf32>
      %c0_77 = arith.constant 0 : index
      %c0_78 = arith.constant 0 : index
      %c0_79 = arith.constant 0 : index
      %104 = vector.load %arg7[%c0_77, %c0_78, %c0_79] : memref<4x32x256xf32, #tpu.memory_space<vmem>>, vector<1x4x256xf32>
      %105 = vector.shape_cast %104 : vector<1x4x256xf32> to vector<4x256xf32>
      %106 = vector.shape_cast %75 : vector<4x256xf32> to vector<1x4x256xf32>
      tpu.vector_store %arg7[%c0_77, %c0_78, %c0_79], %106 {strides = array<i32>} : memref<4x32x256xf32, #tpu.memory_space<vmem>>, vector<1x4x256xf32>,
      %c0_80 = arith.constant 0 : index
      %c8_81 = arith.constant 8 : index
      %c0_82 = arith.constant 0 : index
      %107 = vector.load %arg7[%c0_80, %c8_81, %c0_82] : memref<4x32x256xf32, #tpu.memory_space<vmem>>, vector<1x4x256xf32>
      %108 = vector.shape_cast %107 : vector<1x4x256xf32> to vector<4x256xf32>
      %109 = vector.shape_cast %79 : vector<4x256xf32> to vector<1x4x256xf32>
      tpu.vector_store %arg7[%c0_80, %c8_81, %c0_82], %109 {strides = array<i32>} : memref<4x32x256xf32, #tpu.memory_space<vmem>>, vector<1x4x256xf32>,
      %c0_83 = arith.constant 0 : index
      %c16 = arith.constant 16 : index
      %c0_84 = arith.constant 0 : index
      %110 = vector.load %arg7[%c0_83, %c16, %c0_84] : memref<4x32x256xf32, #tpu.memory_space<vmem>>, vector<1x4x256xf32>
      %111 = vector.shape_cast %110 : vector<1x4x256xf32> to vector<4x256xf32>
      %112 = vector.shape_cast %87 : vector<4x256xf32> to vector<1x4x256xf32>
      tpu.vector_store %arg7[%c0_83, %c16, %c0_84], %112 {strides = array<i32>} : memref<4x32x256xf32, #tpu.memory_space<vmem>>, vector<1x4x256xf32>,
      %c0_85 = arith.constant 0 : index
      %c24 = arith.constant 24 : index
      %c0_86 = arith.constant 0 : index
      %113 = vector.load %arg7[%c0_85, %c24, %c0_86] : memref<4x32x256xf32, #tpu.memory_space<vmem>>, vector<1x4x256xf32>
      %114 = vector.shape_cast %113 : vector<1x4x256xf32> to vector<4x256xf32>
      %115 = vector.shape_cast %71 : vector<4x256xf32> to vector<1x4x256xf32>
      tpu.vector_store %arg7[%c0_85, %c24, %c0_86], %115 {strides = array<i32>} : memref<4x32x256xf32, #tpu.memory_space<vmem>>, vector<1x4x256xf32>,
      %c1_87 = arith.constant 1 : index
      %c0_88 = arith.constant 0 : index
      %c0_89 = arith.constant 0 : index
      %116 = vector.load %arg7[%c1_87, %c0_88, %c0_89] : memref<4x32x256xf32, #tpu.memory_space<vmem>>, vector<1x4x256xf32>
      %117 = vector.shape_cast %116 : vector<1x4x256xf32> to vector<4x256xf32>
      %118 = vector.shape_cast %79 : vector<4x256xf32> to vector<1x4x256xf32>
      tpu.vector_store %arg7[%c1_87, %c0_88, %c0_89], %118 {strides = array<i32>} : memref<4x32x256xf32, #tpu.memory_space<vmem>>, vector<1x4x256xf32>,
      %c1_90 = arith.constant 1 : index
      %c8_91 = arith.constant 8 : index
      %c0_92 = arith.constant 0 : index
      %119 = vector.load %arg7[%c1_90, %c8_91, %c0_92] : memref<4x32x256xf32, #tpu.memory_space<vmem>>, vector<1x4x256xf32>
      %120 = vector.shape_cast %119 : vector<1x4x256xf32> to vector<4x256xf32>
      %121 = vector.shape_cast %83 : vector<4x256xf32> to vector<1x4x256xf32>
      tpu.vector_store %arg7[%c1_90, %c8_91, %c0_92], %121 {strides = array<i32>} : memref<4x32x256xf32, #tpu.memory_space<vmem>>, vector<1x4x256xf32>,
      %c1_93 = arith.constant 1 : index
      %c16_94 = arith.constant 16 : index
      %c0_95 = arith.constant 0 : index
      %122 = vector.load %arg7[%c1_93, %c16_94, %c0_95] : memref<4x32x256xf32, #tpu.memory_space<vmem>>, vector<1x4x256xf32>
      %123 = vector.shape_cast %122 : vector<1x4x256xf32> to vector<4x256xf32>
      %124 = vector.shape_cast %71 : vector<4x256xf32> to vector<1x4x256xf32>
      tpu.vector_store %arg7[%c1_93, %c16_94, %c0_95], %124 {strides = array<i32>} : memref<4x32x256xf32, #tpu.memory_space<vmem>>, vector<1x4x256xf32>,
      %c1_96 = arith.constant 1 : index
      %c24_97 = arith.constant 24 : index
      %c0_98 = arith.constant 0 : index
      %125 = vector.load %arg7[%c1_96, %c24_97, %c0_98] : memref<4x32x256xf32, #tpu.memory_space<vmem>>, vector<1x4x256xf32>
      %126 = vector.shape_cast %125 : vector<1x4x256xf32> to vector<4x256xf32>
      %127 = vector.shape_cast %91 : vector<4x256xf32> to vector<1x4x256xf32>
      tpu.vector_store %arg7[%c1_96, %c24_97, %c0_98], %127 {strides = array<i32>} : memref<4x32x256xf32, #tpu.memory_space<vmem>>, vector<1x4x256xf32>,
      %c2_99 = arith.constant 2 : index
      %c0_100 = arith.constant 0 : index
      %c0_101 = arith.constant 0 : index
      %128 = vector.load %arg7[%c2_99, %c0_100, %c0_101] : memref<4x32x256xf32, #tpu.memory_space<vmem>>, vector<1x4x256xf32>
      %129 = vector.shape_cast %128 : vector<1x4x256xf32> to vector<4x256xf32>
      %130 = vector.shape_cast %87 : vector<4x256xf32> to vector<1x4x256xf32>
      tpu.vector_store %arg7[%c2_99, %c0_100, %c0_101], %130 {strides = array<i32>} : memref<4x32x256xf32, #tpu.memory_space<vmem>>, vector<1x4x256xf32>,
      %c2_102 = arith.constant 2 : index
      %c8_103 = arith.constant 8 : index
      %c0_104 = arith.constant 0 : index
      %131 = vector.load %arg7[%c2_102, %c8_103, %c0_104] : memref<4x32x256xf32, #tpu.memory_space<vmem>>, vector<1x4x256xf32>
      %132 = vector.shape_cast %131 : vector<1x4x256xf32> to vector<4x256xf32>
      %133 = vector.shape_cast %71 : vector<4x256xf32> to vector<1x4x256xf32>
      tpu.vector_store %arg7[%c2_102, %c8_103, %c0_104], %133 {strides = array<i32>} : memref<4x32x256xf32, #tpu.memory_space<vmem>>, vector<1x4x256xf32>,
      %c2_105 = arith.constant 2 : index
      %c16_106 = arith.constant 16 : index
      %c0_107 = arith.constant 0 : index
      %134 = vector.load %arg7[%c2_105, %c16_106, %c0_107] : memref<4x32x256xf32, #tpu.memory_space<vmem>>, vector<1x4x256xf32>
      %135 = vector.shape_cast %134 : vector<1x4x256xf32> to vector<4x256xf32>
      %136 = vector.shape_cast %95 : vector<4x256xf32> to vector<1x4x256xf32>
      tpu.vector_store %arg7[%c2_105, %c16_106, %c0_107], %136 {strides = array<i32>} : memref<4x32x256xf32, #tpu.memory_space<vmem>>, vector<1x4x256xf32>,
      %c2_108 = arith.constant 2 : index
      %c24_109 = arith.constant 24 : index
      %c0_110 = arith.constant 0 : index
      %137 = vector.load %arg7[%c2_108, %c24_109, %c0_110] : memref<4x32x256xf32, #tpu.memory_space<vmem>>, vector<1x4x256xf32>
      %138 = vector.shape_cast %137 : vector<1x4x256xf32> to vector<4x256xf32>
      %139 = vector.shape_cast %99 : vector<4x256xf32> to vector<1x4x256xf32>
      tpu.vector_store %arg7[%c2_108, %c24_109, %c0_110], %139 {strides = array<i32>} : memref<4x32x256xf32, #tpu.memory_space<vmem>>, vector<1x4x256xf32>,
      %c3_111 = arith.constant 3 : index
      %c0_112 = arith.constant 0 : index
      %c0_113 = arith.constant 0 : index
      %140 = vector.load %arg7[%c3_111, %c0_112, %c0_113] : memref<4x32x256xf32, #tpu.memory_space<vmem>>, vector<1x4x256xf32>
      %141 = vector.shape_cast %140 : vector<1x4x256xf32> to vector<4x256xf32>
      %142 = vector.shape_cast %71 : vector<4x256xf32> to vector<1x4x256xf32>
      tpu.vector_store %arg7[%c3_111, %c0_112, %c0_113], %142 {strides = array<i32>} : memref<4x32x256xf32, #tpu.memory_space<vmem>>, vector<1x4x256xf32>,
      %c3_114 = arith.constant 3 : index
      %c8_115 = arith.constant 8 : index
      %c0_116 = arith.constant 0 : index
      %143 = vector.load %arg7[%c3_114, %c8_115, %c0_116] : memref<4x32x256xf32, #tpu.memory_space<vmem>>, vector<1x4x256xf32>
      %144 = vector.shape_cast %143 : vector<1x4x256xf32> to vector<4x256xf32>
      %145 = vector.shape_cast %91 : vector<4x256xf32> to vector<1x4x256xf32>
      tpu.vector_store %arg7[%c3_114, %c8_115, %c0_116], %145 {strides = array<i32>} : memref<4x32x256xf32, #tpu.memory_space<vmem>>, vector<1x4x256xf32>,
      %c3_117 = arith.constant 3 : index
      %c16_118 = arith.constant 16 : index
      %c0_119 = arith.constant 0 : index
      %146 = vector.load %arg7[%c3_117, %c16_118, %c0_119] : memref<4x32x256xf32, #tpu.memory_space<vmem>>, vector<1x4x256xf32>
      %147 = vector.shape_cast %146 : vector<1x4x256xf32> to vector<4x256xf32>
      %148 = vector.shape_cast %99 : vector<4x256xf32> to vector<1x4x256xf32>
      tpu.vector_store %arg7[%c3_117, %c16_118, %c0_119], %148 {strides = array<i32>} : memref<4x32x256xf32, #tpu.memory_space<vmem>>, vector<1x4x256xf32>,
      %c3_120 = arith.constant 3 : index
      %c24_121 = arith.constant 24 : index
      %c0_122 = arith.constant 0 : index
      %149 = vector.load %arg7[%c3_120, %c24_121, %c0_122] : memref<4x32x256xf32, #tpu.memory_space<vmem>>, vector<1x4x256xf32>
      %150 = vector.shape_cast %149 : vector<1x4x256xf32> to vector<4x256xf32>
      %151 = vector.shape_cast %103 : vector<4x256xf32> to vector<1x4x256xf32>
      tpu.vector_store %arg7[%c3_120, %c24_121, %c0_122], %151 {strides = array<i32>} : memref<4x32x256xf32, #tpu.memory_space<vmem>>, vector<1x4x256xf32>,
    } else {
    }
    %c0 = arith.constant 0 : index
    %c0_1 = arith.constant 0 : index
    %3 = vector.load %arg4[%c0, %c0_1] : memref<8x1xf32, #tpu.memory_space<vmem>>, vector<8x1xf32>
    %4 = vector.shape_cast %3 : vector<8x1xf32> to vector<8x1xf32>
    %5 = vector.broadcast %4 : vector<8x1xf32> to vector<8x256xf32>
    %c0_2 = arith.constant 0 : index
    %c0_3 = arith.constant 0 : index
    %c0_4 = arith.constant 0 : index
    %6 = vector.load %arg7[%c0_2, %c0_3, %c0_4] : memref<4x32x256xf32, #tpu.memory_space<vmem>>, vector<1x32x256xf32>
    %7 = vector.shape_cast %6 : vector<1x32x256xf32> to vector<32x256xf32>
    %8 = arith.truncf %7 : vector<32x256xf32> to vector<32x256xbf16>
    %c0_5 = arith.constant 0 : index
    %c0_6 = arith.constant 0 : index
    %c0_7 = arith.constant 0 : index
    %9 = vector.load %arg3[%c0_5, %c0_6, %c0_7] : memref<4x8x32xbf16, #tpu.memory_space<vmem>>, vector<1x8x32xbf16>
    %10 = vector.shape_cast %9 : vector<1x8x32xbf16> to vector<8x32xbf16>
    %cst = arith.constant dense<0.000000e+00> : vector<8x256xf32>
    %11 = tpu.matmul %10, %8, %cst {dimension_numbers = #tpu.dot_dimension_numbers<[1], [0], [0], [1], [0, 0, 1, 1], [], []>} : vector<8x32xbf16>, vector<32x256xbf16>, vector<8x256xf32> -> vector<8x256xf32>
    %12 = arith.addf %11, %5 : vector<8x256xf32>
    %cst_8 = arith.constant 0.000000e+00 : f32
    %13 = vector.broadcast %cst_8 : f32 to vector<8x256xf32>
    %14 = arith.maximumf %12, %13 : vector<8x256xf32>
    %c0_9 = arith.constant 0 : index
    %c0_10 = arith.constant 0 : index
    %c0_11 = arith.constant 0 : index
    %c0_12 = arith.constant 0 : index
    %15 = vector.load %arg6[%c0_9, %c0_10, %c0_11, %c0_12] : memref<1x4x8x256xf32, #tpu.memory_space<vmem>>, vector<1x1x8x256xf32>
    %16 = vector.shape_cast %15 : vector<1x1x8x256xf32> to vector<8x256xf32>
    %17 = vector.shape_cast %14 : vector<8x256xf32> to vector<1x1x8x256xf32>
    tpu.vector_store %arg6[%c0_9, %c0_10, %c0_11, %c0_12], %17 {strides = array<i32>} : memref<1x4x8x256xf32, #tpu.memory_space<vmem>>, vector<1x1x8x256xf32>,
    %c1 = arith.constant 1 : index
    %c0_13 = arith.constant 0 : index
    %c0_14 = arith.constant 0 : index
    %18 = vector.load %arg7[%c1, %c0_13, %c0_14] : memref<4x32x256xf32, #tpu.memory_space<vmem>>, vector<1x32x256xf32>
    %19 = vector.shape_cast %18 : vector<1x32x256xf32> to vector<32x256xf32>
    %20 = arith.truncf %19 : vector<32x256xf32> to vector<32x256xbf16>
    %c1_15 = arith.constant 1 : index
    %c0_16 = arith.constant 0 : index
    %c0_17 = arith.constant 0 : index
    %21 = vector.load %arg3[%c1_15, %c0_16, %c0_17] : memref<4x8x32xbf16, #tpu.memory_space<vmem>>, vector<1x8x32xbf16>
    %22 = vector.shape_cast %21 : vector<1x8x32xbf16> to vector<8x32xbf16>
    %cst_18 = arith.constant dense<0.000000e+00> : vector<8x256xf32>
    %23 = tpu.matmul %22, %20, %cst_18 {dimension_numbers = #tpu.dot_dimension_numbers<[1], [0], [0], [1], [0, 0, 1, 1], [], []>} : vector<8x32xbf16>, vector<32x256xbf16>, vector<8x256xf32> -> vector<8x256xf32>
    %24 = arith.addf %23, %5 : vector<8x256xf32>
    %cst_19 = arith.constant 0.000000e+00 : f32
    %25 = vector.broadcast %cst_19 : f32 to vector<8x256xf32>
    %26 = arith.maximumf %24, %25 : vector<8x256xf32>
    %c0_20 = arith.constant 0 : index
    %c1_21 = arith.constant 1 : index
    %c0_22 = arith.constant 0 : index
    %c0_23 = arith.constant 0 : index
    %27 = vector.load %arg6[%c0_20, %c1_21, %c0_22, %c0_23] : memref<1x4x8x256xf32, #tpu.memory_space<vmem>>, vector<1x1x8x256xf32>
    %28 = vector.shape_cast %27 : vector<1x1x8x256xf32> to vector<8x256xf32>
    %29 = vector.shape_cast %26 : vector<8x256xf32> to vector<1x1x8x256xf32>
    tpu.vector_store %arg6[%c0_20, %c1_21, %c0_22, %c0_23], %29 {strides = array<i32>} : memref<1x4x8x256xf32, #tpu.memory_space<vmem>>, vector<1x1x8x256xf32>,
    %c2 = arith.constant 2 : index
    %c0_24 = arith.constant 0 : index
    %c0_25 = arith.constant 0 : index
    %30 = vector.load %arg7[%c2, %c0_24, %c0_25] : memref<4x32x256xf32, #tpu.memory_space<vmem>>, vector<1x32x256xf32>
    %31 = vector.shape_cast %30 : vector<1x32x256xf32> to vector<32x256xf32>
    %32 = arith.truncf %31 : vector<32x256xf32> to vector<32x256xbf16>
    %c2_26 = arith.constant 2 : index
    %c0_27 = arith.constant 0 : index
    %c0_28 = arith.constant 0 : index
    %33 = vector.load %arg3[%c2_26, %c0_27, %c0_28] : memref<4x8x32xbf16, #tpu.memory_space<vmem>>, vector<1x8x32xbf16>
    %34 = vector.shape_cast %33 : vector<1x8x32xbf16> to vector<8x32xbf16>
    %cst_29 = arith.constant dense<0.000000e+00> : vector<8x256xf32>
    %35 = tpu.matmul %34, %32, %cst_29 {dimension_numbers = #tpu.dot_dimension_numbers<[1], [0], [0], [1], [0, 0, 1, 1], [], []>} : vector<8x32xbf16>, vector<32x256xbf16>, vector<8x256xf32> -> vector<8x256xf32>
    %36 = arith.addf %35, %5 : vector<8x256xf32>
    %cst_30 = arith.constant 0.000000e+00 : f32
    %37 = vector.broadcast %cst_30 : f32 to vector<8x256xf32>
    %38 = arith.maximumf %36, %37 : vector<8x256xf32>
    %c0_31 = arith.constant 0 : index
    %c2_32 = arith.constant 2 : index
    %c0_33 = arith.constant 0 : index
    %c0_34 = arith.constant 0 : index
    %39 = vector.load %arg6[%c0_31, %c2_32, %c0_33, %c0_34] : memref<1x4x8x256xf32, #tpu.memory_space<vmem>>, vector<1x1x8x256xf32>
    %40 = vector.shape_cast %39 : vector<1x1x8x256xf32> to vector<8x256xf32>
    %41 = vector.shape_cast %38 : vector<8x256xf32> to vector<1x1x8x256xf32>
    tpu.vector_store %arg6[%c0_31, %c2_32, %c0_33, %c0_34], %41 {strides = array<i32>} : memref<1x4x8x256xf32, #tpu.memory_space<vmem>>, vector<1x1x8x256xf32>,
    %c3 = arith.constant 3 : index
    %c0_35 = arith.constant 0 : index
    %c0_36 = arith.constant 0 : index
    %42 = vector.load %arg7[%c3, %c0_35, %c0_36] : memref<4x32x256xf32, #tpu.memory_space<vmem>>, vector<1x32x256xf32>
    %43 = vector.shape_cast %42 : vector<1x32x256xf32> to vector<32x256xf32>
    %44 = arith.truncf %43 : vector<32x256xf32> to vector<32x256xbf16>
    %c3_37 = arith.constant 3 : index
    %c0_38 = arith.constant 0 : index
    %c0_39 = arith.constant 0 : index
    %45 = vector.load %arg3[%c3_37, %c0_38, %c0_39] : memref<4x8x32xbf16, #tpu.memory_space<vmem>>, vector<1x8x32xbf16>
    %46 = vector.shape_cast %45 : vector<1x8x32xbf16> to vector<8x32xbf16>
    %cst_40 = arith.constant dense<0.000000e+00> : vector<8x256xf32>
    %47 = tpu.matmul %46, %44, %cst_40 {dimension_numbers = #tpu.dot_dimension_numbers<[1], [0], [0], [1], [0, 0, 1, 1], [], []>} : vector<8x32xbf16>, vector<32x256xbf16>, vector<8x256xf32> -> vector<8x256xf32>
    %48 = arith.addf %47, %5 : vector<8x256xf32>
    %cst_41 = arith.constant 0.000000e+00 : f32
    %49 = vector.broadcast %cst_41 : f32 to vector<8x256xf32>
    %50 = arith.maximumf %48, %49 : vector<8x256xf32>
    %c0_42 = arith.constant 0 : index
    %c3_43 = arith.constant 3 : index
    %c0_44 = arith.constant 0 : index
    %c0_45 = arith.constant 0 : index
    %51 = vector.load %arg6[%c0_42, %c3_43, %c0_44, %c0_45] : memref<1x4x8x256xf32, #tpu.memory_space<vmem>>, vector<1x1x8x256xf32>
    %52 = vector.shape_cast %51 : vector<1x1x8x256xf32> to vector<8x256xf32>
    %53 = vector.shape_cast %50 : vector<8x256xf32> to vector<1x1x8x256xf32>
    tpu.vector_store %arg6[%c0_42, %c3_43, %c0_44, %c0_45], %53 {strides = array<i32>} : memref<1x4x8x256xf32, #tpu.memory_space<vmem>>, vector<1x1x8x256xf32>,
    return
  }
  func.func @transform_0(%arg0: i32, %arg1: i32) -> (i32, i32, i32) {
    %c0_i32 = arith.constant 0 : i32
    %c0_i32_0 = arith.constant 0 : i32
    %c0_i32_1 = arith.constant 0 : i32
    return %arg0, %c0_i32, %c0_i32_0 : i32, i32, i32
  }
  func.func @transform_1(%arg0: i32, %arg1: i32) -> (i32, i32, i32) {
    %c0_i32 = arith.constant 0 : i32
    %c0_i32_0 = arith.constant 0 : i32
    %c0_i32_1 = arith.constant 0 : i32
    return %c0_i32, %arg1, %c0_i32_0 : i32, i32, i32
  }
  func.func @transform_2(%arg0: i32, %arg1: i32) -> (i32, i32) {
    %c0_i32 = arith.constant 0 : i32
    %c0_i32_0 = arith.constant 0 : i32
    return %arg1, %c0_i32 : i32, i32
  }
  func.func @transform_3(%arg0: i32, %arg1: i32) -> (i32, i32) {
    %c0_i32 = arith.constant 0 : i32
    %c0_i32_0 = arith.constant 0 : i32
    %c0_i32_1 = arith.constant 0 : i32
    return %c0_i32, %c0_i32_0 : i32, i32
  }
  func.func @transform_4(%arg0: i32, %arg1: i32) -> (i32, i32, i32, i32) {
    %c0_i32 = arith.constant 0 : i32
    %c0_i32_0 = arith.constant 0 : i32
    %c0_i32_1 = arith.constant 0 : i32
    return %arg0, %c0_i32, %arg1, %c0_i32_0 : i32, i32, i32, i32
  }
}

</mosaic_0001>

<llo_original>
// kernel: trans_conv2d_block_forward.1
$region0: #{trans_conv2d_block_forward.1}
  #allocation0 [shape = 'u32[]', space=smem, size = 0x4, offset = 0x4, fixed_abs, tag = 'smem constant byte address 0x4 - core index']
  #allocation1 [shape = 'u32[144,128]{1,0:T(1,128)}', space=vmem, size = 0x12000, scoped, tag = 'internal scratch']
  #allocation2 [shape = 'f32[4,32,256]{2,1,0:T(8,128)}', space=vmem, size = 0x20000, scoped, tag = 'scratch operand']
  %s0 = inlined_call_operand.vmem [shape: f32[2,4,256], index: 0, kind: input, shape index: {}]
  %s1 = inlined_call_operand.vmem [shape: bf16[4,16,32], index: 1, kind: input, shape index: {}]
  %s2 = inlined_call_operand.vmem [shape: f32[16,1], index: 2, kind: input, shape index: {}]
  %s3 = inlined_call_operand.vmem [shape: f32[9,256], index: 3, kind: input, shape index: {}]
  %s4 = inlined_call_operand.vmem [shape: f32[2,4,16,256], index: 4, kind: output, shape index: {}]
  %s5 = sld [smem:[#allocation0]]
  $region113: #{trans_conv2d_block_forward.1} parent=0
    _
  %s7 = ssub.s32 1, %s5
  %s8 = scalar_select 0, %s7, %s5
  $region1: #{trans_conv2d_block_forward.1} parent=0
    #allocation3 [shape = 'u8[16384]{0}', space=vmem, size = 0x4000, scoped, tag = 'input window, operand 1']
    #allocation4 [shape = 'u8[65536]{0}', space=vmem, size = 0x10000, scoped, tag = 'output window, operand 0']
    loop: start=0, step=1, limit=6
    $region2: #{trans_conv2d_block_forward.1} parent=1 // loop_pre_header
      _
    $region3: #{trans_conv2d_block_forward.1} parent=1 // loop_header
      %s10 = sphi 0, %s14
      %p11 = scmp.ge.s32.totalorder %s10, 6
      %s17 = sphi 0, %s29
      %s18 = sphi 0, %s25
      %s19 = sphi 0, %s17
      %s20 = sphi 0, %s18
      %s21 = sphi 0, %s19
      %s22 = sphi 0, %s20
      %s32 = sphi 0, %s34
      %s35 = sphi 0, %s32
      %s36 = sphi 0, %s35
      %s52 = sphi 0, %s36
      %s58 = sphi 0, %s60
      %s61 = sphi 0, %s58
      %s62 = sphi 0, %s61
      %s78 = sphi 0, %s62
      %s84 = sphi 0, %s86
      %s87 = sphi 0, %s84
      %s88 = sphi 0, %s87
      %s104 = sphi 0, %s88
      %s108 = sphi 0, %s108
      %s110 = sphi 0, %s108
      %s111 = sphi 0, %s110
      %s125 = sphi 0, %s111
      %s133 = sphi 0, %s135
      %s136 = sphi 0, %s133
      %s137 = sphi 0, %s136
      %s153 = sphi 0, %s137
    $region4: #{trans_conv2d_block_forward.1} parent=1 // loop_header_branch
      %13 = sbr.rel (%p11) target = $region8
    $region5: #{trans_conv2d_block_forward.1} parent=1 // loop_body
      %s15 = ssub.s32 %s10, 1
      %s16 = ssub.s32 %s10, 2
      %s23 = sadd.s32 1, %s18
      %p24 = scmp.ge.s32.totalorder %s23, 2
      %s25 = scalar_select %p24, 0, %s23
      %s26 = sadd.s32 1, %s17
      %s27 = scalar_select %p24, %s26, %s17
      %p28 = scmp.ge.s32.totalorder %s27, 2
      %s29 = scalar_select %p28, 0, %s27
      %s30 = ssub.s32 %s17, %s29
      %p31 = scmp.eq.s32.totalorder %s30, 0
      %s33 = sadd.s32 %s32, 1
      %s34 = scalar_select %p31, %s32, %s33
      %p37 = pneg %p31
      %p38 = scmp.eq.s32.totalorder %s10, 3
      %p39 = por %p37, %p38
      %p40 = scmp.ne.s32.totalorder %s32, %s35
      %p41 = scmp.eq.s32.totalorder %s10, 0
      %p42 = por %p40, %p41
      %p43 = scmp.ne.s32.totalorder %s32, %s35
      %p44 = scmp.eq.s32.totalorder %s15, 3
      %p45 = por %p43, %p44
      %p46 = scmp.ne.s32.totalorder %s35, %s36
      %p47 = scmp.eq.s32.totalorder %s15, 0
      %p48 = por %p46, %p47
      %p49 = scmp.ne.s32.totalorder %s35, %s36
      %p50 = scmp.eq.s32.totalorder %s16, 3
      %p51 = por %p49, %p50
      %p53 = scmp.ne.s32.totalorder %s36, %s52
      %p54 = scmp.eq.s32.totalorder %s16, 0
      %p55 = por %p53, %p54
      %s56 = ssub.s32 %s18, %s25
      %p57 = scmp.eq.s32.totalorder %s56, 0
      %s59 = sadd.s32 %s58, 1
      %s60 = scalar_select %p57, %s58, %s59
      %p63 = pneg %p57
      %p64 = scmp.eq.s32.totalorder %s10, 3
      %p65 = por %p63, %p64
      %p66 = scmp.ne.s32.totalorder %s58, %s61
      %p67 = scmp.eq.s32.totalorder %s10, 0
      %p68 = por %p66, %p67
      %p69 = scmp.ne.s32.totalorder %s58, %s61
      %p70 = scmp.eq.s32.totalorder %s15, 3
      %p71 = por %p69, %p70
      %p72 = scmp.ne.s32.totalorder %s61, %s62
      %p73 = scmp.eq.s32.totalorder %s15, 0
      %p74 = por %p72, %p73
      %p75 = scmp.ne.s32.totalorder %s61, %s62
      %p76 = scmp.eq.s32.totalorder %s16, 3
      %p77 = por %p75, %p76
      %p79 = scmp.ne.s32.totalorder %s62, %s78
      %p80 = scmp.eq.s32.totalorder %s16, 0
      %p81 = por %p79, %p80
      %s82 = ssub.s32 %s18, %s25
      %p83 = scmp.eq.s32.totalorder %s82, 0
      %s85 = sadd.s32 %s84, 1
      %s86 = scalar_select %p83, %s84, %s85
      %p89 = pneg %p83
      %p90 = scmp.eq.s32.totalorder %s10, 3
      %p91 = por %p89, %p90
      %p92 = scmp.ne.s32.totalorder %s84, %s87
      %p93 = scmp.eq.s32.totalorder %s10, 0
      %p94 = por %p92, %p93
      %p95 = scmp.ne.s32.totalorder %s84, %s87
      %p96 = scmp.eq.s32.totalorder %s15, 3
      %p97 = por %p95, %p96
      %p98 = scmp.ne.s32.totalorder %s87, %s88
      %p99 = scmp.eq.s32.totalorder %s15, 0
      %p100 = por %p98, %p99
      %p101 = scmp.ne.s32.totalorder %s87, %s88
      %p102 = scmp.eq.s32.totalorder %s16, 3
      %p103 = por %p101, %p102
      %p105 = scmp.ne.s32.totalorder %s88, %s104
      %p106 = scmp.eq.s32.totalorder %s16, 0
      %p107 = por %p105, %p106
      %s109 = sadd.s32 %s108, 1
      %p112 = scmp.eq.s32.totalorder %s10, 3
      %p113 = scmp.ne.s32.totalorder %s108, %s110
      %p114 = scmp.eq.s32.totalorder %s10, 0
      %p115 = por %p113, %p114
      %p116 = scmp.ne.s32.totalorder %s108, %s110
      %p117 = scmp.eq.s32.totalorder %s15, 3
      %p118 = por %p116, %p117
      %p119 = scmp.ne.s32.totalorder %s110, %s111
      %p120 = scmp.eq.s32.totalorder %s15, 0
      %p121 = por %p119, %p120
      %p122 = scmp.ne.s32.totalorder %s110, %s111
      %p123 = scmp.eq.s32.totalorder %s16, 3
      %p124 = por %p122, %p123
      %p126 = scmp.ne.s32.totalorder %s111, %s125
      %p127 = scmp.eq.s32.totalorder %s16, 0
      %p128 = por %p126, %p127
      %s129 = ssub.s32 %s17, %s29
      %s130 = ssub.s32 %s18, %s25
      %s131 = sor.u32 %s129, %s130
      %p132 = scmp.eq.s32.totalorder %s131, 0
      %s134 = sadd.s32 %s133, 1
      %s135 = scalar_select %p132, %s133, %s134
      %p138 = pneg %p132
      %p139 = scmp.eq.s32.totalorder %s10, 3
      %p140 = por %p138, %p139
      %p141 = scmp.ne.s32.totalorder %s133, %s136
      %p142 = scmp.eq.s32.totalorder %s10, 0
      %p143 = por %p141, %p142
      %p144 = scmp.ne.s32.totalorder %s133, %s136
      %p145 = scmp.eq.s32.totalorder %s15, 3
      %p146 = por %p144, %p145
      %p147 = scmp.ne.s32.totalorder %s136, %s137
      %p148 = scmp.eq.s32.totalorder %s15, 0
      %p149 = por %p147, %p148
      %p150 = scmp.ne.s32.totalorder %s136, %s137
      %p151 = scmp.eq.s32.totalorder %s16, 3
      %p152 = por %p150, %p151
      %p154 = scmp.ne.s32.totalorder %s137, %s153
      %p155 = scmp.eq.s32.totalorder %s16, 0
      %p156 = por %p154, %p155
      %p157 = scmp.le.s32.totalorder 1, %s10
      %p158 = scmp.lt.s32.totalorder %s10, 5
      %p159 = pnand %p157, %p158
      %p160 = pneg %p159
      // Predicated region
      $region9: #{trans_conv2d_block_forward.1} parent=5 // pred_check
        _
      $region10: #{trans_conv2d_block_forward.1} parent=5 // pred_check_branch
        %162 = sbr.rel (%p159) target = $region12
      $region11: #{trans_conv2d_block_forward.1} parent=5 // pred_region
        %s163 = ssub.s32 %s10, 1
        // Predicated region
        $region13: #{trans_conv2d_block_forward.1} parent=11 // pred_check
          %p164 = pneg %p121
        $region14: #{trans_conv2d_block_forward.1} parent=11 // pred_check_branch
          %166 = sbr.rel (%p164) target = $region16
        $region15: #{trans_conv2d_block_forward.1} parent=11 // pred_region
          _
        $region16: #{trans_conv2d_block_forward.1} parent=11 // pred_fallthru
          _
      $region12: #{trans_conv2d_block_forward.1} parent=5 // pred_fallthru
        _
      %p167 = scmp.lt.s32.totalorder %s10, 4
      // Predicated region
      $region17: #{trans_conv2d_block_forward.1} parent=5 // pred_check
        %p168 = pneg %p167
      $region18: #{trans_conv2d_block_forward.1} parent=5 // pred_check_branch
        %170 = sbr.rel (%p168) target = $region20
      $region19: #{trans_conv2d_block_forward.1} parent=5 // pred_region
        // Predicated region
        $region21: #{trans_conv2d_block_forward.1} parent=19 // pred_check
          %p171 = pneg %p42
        $region22: #{trans_conv2d_block_forward.1} parent=19 // pred_check_branch
          %173 = sbr.rel (%p171) target = $region24
        $region23: #{trans_conv2d_block_forward.1} parent=19 // pred_region
          %p174 = scmp.lt.s32.totalorder %s17, 1
          %s175 = scalar_select %p174, %s17, 1
          %s176 = smul.addr %s175, 2
          %s177 = smul.addr %s176, 4
          %s178 = scalar_lea.vmem %s0, %s177
        $region24: #{trans_conv2d_block_forward.1} parent=19 // pred_fallthru
          _
        // Predicated region
        $region25: #{trans_conv2d_block_forward.1} parent=19 // pred_check
          %p179 = pneg %p68
        $region26: #{trans_conv2d_block_forward.1} parent=19 // pred_check_branch
          %181 = sbr.rel (%p179) target = $region28
        $region27: #{trans_conv2d_block_forward.1} parent=19 // pred_region
          %s182 = sand.u32 %s58, 1
          %s183 = sand.u32 %s58, 1
          %s184 = smul.addr %s183, 16
          %s185 = scalar_lea.vmem [#allocation3], %s184
          %s186 = smul.addr %s18, 4
          %s187 = scalar_lea.vmem %s1, %s186
          // Predicated region
          $region29: #{trans_conv2d_block_forward.1} parent=27 // pred_check
            _
          $region30: #{trans_conv2d_block_forward.1} parent=27 // pred_check_branch
            %189 = sbr.rel (0) target = $region32
          $region31: #{trans_conv2d_block_forward.1} parent=27 // pred_region
            // Predicated region
            $region33: #{trans_conv2d_block_forward.1} parent=31 // pred_check
              _
            $region34: #{trans_conv2d_block_forward.1} parent=31 // pred_check_branch
              %191 = sbr.rel target = $region36
            $region35: #{trans_conv2d_block_forward.1} parent=31 // pred_region
              // Predicated region
              $region48: #{trans_conv2d_block_forward.1} parent=35 // pred_check
                _
              $region49: #{trans_conv2d_block_forward.1} parent=35 // pred_check_branch
                %212 = sbr.rel (0) target = $region51
              $region50: #{trans_conv2d_block_forward.1} parent=35 // pred_region
                loop: start=0, step=1, limit=1
                $region52: #{trans_conv2d_block_forward.1} parent=50 // loop_pre_header
                  _
                $region53: #{trans_conv2d_block_forward.1} parent=50 // loop_header
                  %s214 = sphi 0, %s218
                  %p215 = scmp.ge.s32.totalorder %s214, 1
                  %s219 = sphi %s187, %s187
                  %s220 = sphi %s185, %s185
                $region54: #{trans_conv2d_block_forward.1} parent=50 // loop_header_branch
                  %217 = sbr.rel (%p215) target = $region58
                $region55: #{trans_conv2d_block_forward.1} parent=50 // loop_body
                  _
                $region56: #{trans_conv2d_block_forward.1} parent=50 // loop_footer
                  %s218 = sadd.s32 1, %s214
                $region57: #{trans_conv2d_block_forward.1} parent=50 // loop_footer_branch
                  %213 = sbr.rel target = $region53
                $region58: #{trans_conv2d_block_forward.1} parent=50 // loop_exit
                  _
                loop: start=0, step=1, limit=1
                $region59: #{trans_conv2d_block_forward.1} parent=50 // loop_pre_header
                  _
                $region60: #{trans_conv2d_block_forward.1} parent=50 // loop_header
                  %s223 = sphi 0, %s227
                  %p224 = scmp.ge.s32.totalorder %s223, 1
                  %s228 = sphi %s187, %s187
                  %s229 = sphi %s185, %s185
                $region61: #{trans_conv2d_block_forward.1} parent=50 // loop_header_branch
                  %226 = sbr.rel (%p224) target = $region65
                $region62: #{trans_conv2d_block_forward.1} parent=50 // loop_body
                  %v230 = vld [vmem:[%s228] sm:$0xf]
                  %231 = vst [vmem:[%s229] sm:$0xf] %v230
                  %v232 = vld [vmem:[%s228 + $0x8] sm:$0xf]
                  %233 = vst [vmem:[%s229 + $0x4] sm:$0xf] %v232
                  %v234 = vld [vmem:[%s228 + $0x10] sm:$0xf]
                  %235 = vst [vmem:[%s229 + $0x8] sm:$0xf] %v234
                  %v236 = vld [vmem:[%s228 + $0x18] sm:$0xf]
                  %237 = vst [vmem:[%s229 + $0xc] sm:$0xf] %v236
                $region63: #{trans_conv2d_block_forward.1} parent=50 // loop_footer
                  %s227 = sadd.s32 1, %s223
                $region64: #{trans_conv2d_block_forward.1} parent=50 // loop_footer_branch
                  %222 = sbr.rel target = $region60
                $region65: #{trans_conv2d_block_forward.1} parent=50 // loop_exit
                  _
              $region51: #{trans_conv2d_block_forward.1} parent=35 // pred_fallthru
                _
            $region36: #{trans_conv2d_block_forward.1} parent=31 // pred_fallthru
              _
            // Predicated region
            $region37: #{trans_conv2d_block_forward.1} parent=31 // pred_check
              _
            $region38: #{trans_conv2d_block_forward.1} parent=31 // pred_check_branch
              %193 = sbr.rel (0) target = $region40
            $region39: #{trans_conv2d_block_forward.1} parent=31 // pred_region
              loop: start=0, step=1, limit=1
              $region41: #{trans_conv2d_block_forward.1} parent=39 // loop_pre_header
                _
              $region42: #{trans_conv2d_block_forward.1} parent=39 // loop_header
                %s196 = sphi 0, %s200
                %p197 = scmp.ge.s32.totalorder %s196, 1
                %s201 = sphi %s187, %s187
                %s202 = sphi %s185, %s185
              $region43: #{trans_conv2d_block_forward.1} parent=39 // loop_header_branch
                %199 = sbr.rel (%p197) target = $region47
              $region44: #{trans_conv2d_block_forward.1} parent=39 // loop_body
                %v203 = vld [vmem:[%s201] sm:$0xf]
                %204 = vst [vmem:[%s202] sm:$0xf] %v203
                %v205 = vld [vmem:[%s201 + $0x8] sm:$0xf]
                %206 = vst [vmem:[%s202 + $0x4] sm:$0xf] %v205
                %v207 = vld [vmem:[%s201 + $0x10] sm:$0xf]
                %208 = vst [vmem:[%s202 + $0x8] sm:$0xf] %v207
                %v209 = vld [vmem:[%s201 + $0x18] sm:$0xf]
                %210 = vst [vmem:[%s202 + $0xc] sm:$0xf] %v209
              $region45: #{trans_conv2d_block_forward.1} parent=39 // loop_footer
                %s200 = sadd.s32 1, %s196
              $region46: #{trans_conv2d_block_forward.1} parent=39 // loop_footer_branch
                %195 = sbr.rel target = $region42
              $region47: #{trans_conv2d_block_forward.1} parent=39 // loop_exit
                _
            $region40: #{trans_conv2d_block_forward.1} parent=31 // pred_fallthru
              _
          $region32: #{trans_conv2d_block_forward.1} parent=27 // pred_fallthru
            _
          %238 = vnop
        $region28: #{trans_conv2d_block_forward.1} parent=19 // pred_fallthru
          _
        // Predicated region
        $region66: #{trans_conv2d_block_forward.1} parent=19 // pred_check
          %p239 = pneg %p94
        $region67: #{trans_conv2d_block_forward.1} parent=19 // pred_check_branch
          %241 = sbr.rel (%p239) target = $region69
        $region68: #{trans_conv2d_block_forward.1} parent=19 // pred_region
          %p242 = scmp.lt.s32.totalorder %s18, 1
          %s243 = scalar_select %p242, %s18, 1
          %s244 = smul.addr %s243, 8
          %s245 = scalar_lea.vmem %s2, %s244
        $region69: #{trans_conv2d_block_forward.1} parent=19 // pred_fallthru
          _
      $region20: #{trans_conv2d_block_forward.1} parent=5 // pred_fallthru
        _
      %p246 = scmp.le.s32.totalorder 1, %s10
      %p247 = scmp.lt.s32.totalorder %s10, 5
      %p248 = pnand %p246, %p247
      %p249 = pneg %p248
      // Predicated region
      $region70: #{trans_conv2d_block_forward.1} parent=5 // pred_check
        _
      $region71: #{trans_conv2d_block_forward.1} parent=5 // pred_check_branch
        %251 = sbr.rel (%p248) target = $region73
      $region72: #{trans_conv2d_block_forward.1} parent=5 // pred_region
        %s252 = ssub.s32 %s10, 1
        %s253 = sand.u32 %s61, 1
        %s254 = sand.u32 %s61, 1
        %s255 = smul.addr %s254, 16
        %s256 = scalar_lea.vmem [#allocation3], %s255
        // Predicated region
        $region74: #{trans_conv2d_block_forward.1} parent=72 // pred_check
          %p257 = pneg %p74
        $region75: #{trans_conv2d_block_forward.1} parent=72 // pred_check_branch
          %259 = sbr.rel (%p257) target = $region77
        $region76: #{trans_conv2d_block_forward.1} parent=72 // pred_region
          _
        $region77: #{trans_conv2d_block_forward.1} parent=72 // pred_fallthru
          _
        %p260 = scmp.lt.s32.totalorder %s19, 1
        %s261 = scalar_select %p260, %s19, 1
        %s262 = smul.addr %s261, 2
        %s263 = smul.addr %s262, 4
        %s264 = scalar_lea.vmem %s0, %s263
        %p265 = pneg %p48
        %p266 = pneg %p45
        %s267 = sand.u32 %s61, 1
        %s268 = sand.u32 %s61, 1
        %s269 = smul.addr %s268, 16
        %s270 = scalar_lea.vmem [#allocation3], %s269
        %p271 = pneg %p74
        %p272 = pneg %p71
        %p273 = scmp.lt.s32.totalorder %s20, 1
        %s274 = scalar_select %p273, %s20, 1
        %s275 = smul.addr %s274, 8
        %s276 = scalar_lea.vmem %s2, %s275
        %p277 = pneg %p100
        %p278 = pneg %p97
        %p279 = pneg %p121
        %p280 = pneg %p118
        %p281 = pneg %p149
        %p282 = pneg %p146
        %s283 = sand.u32 %s136, 1
        %s284 = sand.u32 %s136, 1
        %s285 = smul.addr %s284, 64
        %s286 = scalar_lea.vmem [#allocation4], %s285
        %p287 = scmp.lt.s32.totalorder %s19, 1
        %s288 = scalar_select %p287, %s19, 1
        %s289 = smul.addr %s288, 2
        %s290 = smul.addr %s289, 4
        %s291 = scalar_lea.vmem %s0, %s290
        %p292 = scmp.lt.s32.totalorder %s20, 1
        %s293 = scalar_select %p292, %s20, 1
        %s294 = smul.addr %s293, 8
        %s295 = scalar_lea.vmem %s2, %s294
        %p297 = scmp.eq.s32.totalorder %s20, 0
        // Predicated region
        $region78: #{trans_conv2d_block_forward.1} parent=72 // pred_check
          %p298 = pneg %p297
        $region79: #{trans_conv2d_block_forward.1} parent=72 // pred_check_branch
          %300 = sbr.rel (%p298) target = $region81
        $region80: #{trans_conv2d_block_forward.1} parent=72 // pred_region
          %301 = vst [vmem:[#allocation2] sm:$0xff] 0.0
          %302 = vst [vmem:[#allocation2 + $0x8] sm:$0xff] 0.0
          %303 = vst [vmem:[#allocation2 + $0x10] sm:$0xff] 0.0
          %304 = vst [vmem:[#allocation2 + $0x18] sm:$0xff] 0.0
          %305 = vst [vmem:[#allocation2 + $0x20] sm:$0xff] 0.0
          %306 = vst [vmem:[#allocation2 + $0x28] sm:$0xff] 0.0
          %307 = vst [vmem:[#allocation2 + $0x30] sm:$0xff] 0.0
          %308 = vst [vmem:[#allocation2 + $0x38] sm:$0xff] 0.0
          %s309 = scalar_lea.vmem [#allocation2], 64
          %310 = vst [vmem:[%s309] sm:$0xff] 0.0
          %311 = vst [vmem:[%s309 + $0x8] sm:$0xff] 0.0
          %312 = vst [vmem:[%s309 + $0x10] sm:$0xff] 0.0
          %313 = vst [vmem:[%s309 + $0x18] sm:$0xff] 0.0
          %314 = vst [vmem:[%s309 + $0x20] sm:$0xff] 0.0
          %315 = vst [vmem:[%s309 + $0x28] sm:$0xff] 0.0
          %316 = vst [vmem:[%s309 + $0x30] sm:$0xff] 0.0
          %317 = vst [vmem:[%s309 + $0x38] sm:$0xff] 0.0
          %s318 = scalar_lea.vmem [#allocation2], 128
          %319 = vst [vmem:[%s318] sm:$0xff] 0.0
          %320 = vst [vmem:[%s318 + $0x8] sm:$0xff] 0.0
          %321 = vst [vmem:[%s318 + $0x10] sm:$0xff] 0.0
          %322 = vst [vmem:[%s318 + $0x18] sm:$0xff] 0.0
          %323 = vst [vmem:[%s318 + $0x20] sm:$0xff] 0.0
          %324 = vst [vmem:[%s318 + $0x28] sm:$0xff] 0.0
          %325 = vst [vmem:[%s318 + $0x30] sm:$0xff] 0.0
          %326 = vst [vmem:[%s318 + $0x38] sm:$0xff] 0.0
          %s327 = scalar_lea.vmem [#allocation2], 192
          %328 = vst [vmem:[%s327] sm:$0xff] 0.0
          %329 = vst [vmem:[%s327 + $0x8] sm:$0xff] 0.0
          %330 = vst [vmem:[%s327 + $0x10] sm:$0xff] 0.0
          %331 = vst [vmem:[%s327 + $0x18] sm:$0xff] 0.0
          %332 = vst [vmem:[%s327 + $0x20] sm:$0xff] 0.0
          %333 = vst [vmem:[%s327 + $0x28] sm:$0xff] 0.0
          %334 = vst [vmem:[%s327 + $0x30] sm:$0xff] 0.0
          %335 = vst [vmem:[%s327 + $0x38] sm:$0xff] 0.0
          %v336 = vld [vmem:[%s291] sm:$0xff]
          %v338 = vcombine.high %v336, %v336
          %340 = vrot.lane.b32.xlu0 %v336, 17
          %v341 = vpop.permute.xlu0 %340
          %342 = vrot.lane.b32.xlu0 %v338, 17
          %v343 = vpop.permute.xlu0 %342
          %v344 = vlaneseq
          %v345 = vand.u32 %v344, 127
          %vm346 = vcmp.lt.s32.totalorder %v345, 17
          %v347 = vsel %vm346, %v341, %v343
          %v348 = vsel %vm346, %v343, %v341
          %v349 = vld [vmem:[%s3] ss:$8 sm:$0x3]
          %v351 = vlaneseq
          %v352 = vshrl.u32 %v351, 7
          %v353 = vsub.s32 0, %v352
          %v354 = vrot.slane %v349, %v353
          %v355 = vlaneseq
          %v356 = vshrl.u32 %v355, 7
          %v357 = vsub.s32 1, %v356
          %v358 = vrot.slane %v349, %v357
          %v361 = vmul.f32 %v348, %v354
          %v362 = vmul.f32 %v347, %v358
          %363 = vrot.lane.b32.xlu0 %v336, 16
          %v364 = vpop.permute.xlu0 %363
          %365 = vrot.lane.b32.xlu0 %v338, 16
          %v366 = vpop.permute.xlu0 %365
          %vm367 = vcmp.lt.s32.totalorder %v345, 16
          %v368 = vsel %vm367, %v364, %v366
          %v369 = vsel %vm367, %v366, %v364
          %s370 = scalar_lea.vmem %s3, 1
          %v371 = vld [vmem:[%s370] ss:$8 sm:$0x3]
          %v373 = vlaneseq
          %v374 = vshrl.u32 %v373, 7
          %v375 = vsub.s32 0, %v374
          %v376 = vrot.slane %v371, %v375
          %v377 = vlaneseq
          %v378 = vshrl.u32 %v377, 7
          %v379 = vsub.s32 1, %v378
          %v380 = vrot.slane %v371, %v379
          %v383 = vmul.f32 %v369, %v376
          %v384 = vmul.f32 %v368, %v380
          %385 = vrot.lane.b32.xlu0 %v336, 15
          %v386 = vpop.permute.xlu0 %385
          %387 = vrot.lane.b32.xlu0 %v338, 15
          %v388 = vpop.permute.xlu0 %387
          %vm389 = vcmp.lt.s32.totalorder %v345, 15
          %v390 = vsel %vm389, %v386, %v388
          %v391 = vsel %vm389, %v388, %v386
          %s392 = scalar_lea.vmem %s3, 2
          %v393 = vld [vmem:[%s392] ss:$8 sm:$0x3]
          %v395 = vlaneseq
          %v396 = vshrl.u32 %v395, 7
          %v397 = vsub.s32 0, %v396
          %v398 = vrot.slane %v393, %v397
          %v399 = vlaneseq
          %v400 = vshrl.u32 %v399, 7
          %v401 = vsub.s32 1, %v400
          %v402 = vrot.slane %v393, %v401
          %v405 = vmul.f32 %v391, %v398
          %v406 = vmul.f32 %v390, %v402
          %407 = vrot.lane.b32.xlu0 %v336, 1
          %v408 = vpop.permute.xlu0 %407
          %409 = vrot.lane.b32.xlu0 %v338, 1
          %v410 = vpop.permute.xlu0 %409
          %vm411 = vcmp.lt.s32.totalorder %v345, 1
          %v412 = vsel %vm411, %v408, %v410
          %v413 = vsel %vm411, %v410, %v408
          %s414 = scalar_lea.vmem %s3, 3
          %v415 = vld [vmem:[%s414] ss:$8 sm:$0x3]
          %v417 = vlaneseq
          %v418 = vshrl.u32 %v417, 7
          %v419 = vsub.s32 0, %v418
          %v420 = vrot.slane %v415, %v419
          %v421 = vlaneseq
          %v422 = vshrl.u32 %v421, 7
          %v423 = vsub.s32 1, %v422
          %v424 = vrot.slane %v415, %v423
          %v427 = vmul.f32 %v413, %v420
          %v428 = vmul.f32 %v412, %v424
          %429 = vrot.lane.b32.xlu0 %v336, 127
          %v430 = vpop.permute.xlu0 %429
          %431 = vrot.lane.b32.xlu0 %v338, 127
          %v432 = vpop.permute.xlu0 %431
          %vm433 = vcmp.lt.s32.totalorder %v345, 127
          %v434 = vsel %vm433, %v430, %v432
          %v435 = vsel %vm433, %v432, %v430
          %s436 = scalar_lea.vmem %s3, 5
          %v437 = vld [vmem:[%s436] ss:$8 sm:$0x3]
          %v439 = vlaneseq
          %v440 = vshrl.u32 %v439, 7
          %v441 = vsub.s32 0, %v440
          %v442 = vrot.slane %v437, %v441
          %v443 = vlaneseq
          %v444 = vshrl.u32 %v443, 7
          %v445 = vsub.s32 1, %v444
          %v446 = vrot.slane %v437, %v445
          %v449 = vmul.f32 %v434, %v442
          %v450 = vmul.f32 %v435, %v446
          %451 = vrot.lane.b32.xlu0 %v336, 113
          %v452 = vpop.permute.xlu0 %451
          %453 = vrot.lane.b32.xlu0 %v338, 113
          %v454 = vpop.permute.xlu0 %453
          %vm455 = vcmp.lt.s32.totalorder %v345, 113
          %v456 = vsel %vm455, %v452, %v454
          %v457 = vsel %vm455, %v454, %v452
          %s458 = scalar_lea.vmem %s3, 6
          %v459 = vld [vmem:[%s458] ss:$8 sm:$0x3]
          %v461 = vlaneseq
          %v462 = vshrl.u32 %v461, 7
          %v463 = vsub.s32 0, %v462
          %v464 = vrot.slane %v459, %v463
          %v465 = vlaneseq
          %v466 = vshrl.u32 %v465, 7
          %v467 = vsub.s32 1, %v466
          %v468 = vrot.slane %v459, %v467
          %v471 = vmul.f32 %v456, %v464
          %v472 = vmul.f32 %v457, %v468
          %473 = vrot.lane.b32.xlu0 %v336, 112
          %v474 = vpop.permute.xlu0 %473
          %475 = vrot.lane.b32.xlu0 %v338, 112
          %v476 = vpop.permute.xlu0 %475
          %vm477 = vcmp.lt.s32.totalorder %v345, 112
          %v478 = vsel %vm477, %v474, %v476
          %v479 = vsel %vm477, %v476, %v474
          %s480 = scalar_lea.vmem %s3, 7
          %v481 = vld [vmem:[%s480] ss:$8 sm:$0x3]
          %v483 = vlaneseq
          %v484 = vshrl.u32 %v483, 7
          %v485 = vsub.s32 0, %v484
          %v486 = vrot.slane %v481, %v485
          %v487 = vlaneseq
          %v488 = vshrl.u32 %v487, 7
          %v489 = vsub.s32 1, %v488
          %v490 = vrot.slane %v481, %v489
          %v493 = vmul.f32 %v478, %v486
          %v494 = vmul.f32 %v479, %v490
          %495 = vrot.lane.b32.xlu0 %v336, 111
          %v496 = vpop.permute.xlu0 %495
          %497 = vrot.lane.b32.xlu0 %v338, 111
          %v498 = vpop.permute.xlu0 %497
          %vm499 = vcmp.lt.s32.totalorder %v345, 111
          %v500 = vsel %vm499, %v496, %v498
          %v501 = vsel %vm499, %v498, %v496
          %s502 = scalar_lea.vmem %s3, 16
          %v503 = vld [vmem:[%s502] ss:$8 sm:$0x3]
          %v505 = vlaneseq
          %v506 = vshrl.u32 %v505, 7
          %v507 = vsub.s32 0, %v506
          %v508 = vrot.slane %v503, %v507
          %v509 = vlaneseq
          %v510 = vshrl.u32 %v509, 7
          %v511 = vsub.s32 1, %v510
          %v512 = vrot.slane %v503, %v511
          %v515 = vmul.f32 %v500, %v508
          %v516 = vmul.f32 %v501, %v512
          %517 = vst [vmem:[#allocation2] sm:$0xf] %v361
          %518 = vst [vmem:[#allocation2 + $0x8] sm:$0xf] %v362
          %519 = vst [vmem:[#allocation2 + $0x10] sm:$0xf] %v383
          %520 = vst [vmem:[#allocation2 + $0x18] sm:$0xf] %v384
          %521 = vst [vmem:[#allocation2 + $0x20] sm:$0xf] %v427
          %522 = vst [vmem:[#allocation2 + $0x28] sm:$0xf] %v428
          %523 = vst [vmem:[#allocation2 + $0x30] sm:$0xf] %v336
          %524 = vst [vmem:[#allocation2 + $0x38] sm:$0xf] %v338
          %525 = vst [vmem:[%s309] sm:$0xf] %v383
          %526 = vst [vmem:[%s309 + $0x8] sm:$0xf] %v384
          %527 = vst [vmem:[%s309 + $0x10] sm:$0xf] %v405
          %528 = vst [vmem:[%s309 + $0x18] sm:$0xf] %v406
          %529 = vst [vmem:[%s309 + $0x20] sm:$0xf] %v336
          %530 = vst [vmem:[%s309 + $0x28] sm:$0xf] %v338
          %531 = vst [vmem:[%s309 + $0x30] sm:$0xf] %v449
          %532 = vst [vmem:[%s309 + $0x38] sm:$0xf] %v450
          %533 = vst [vmem:[%s318] sm:$0xf] %v427
          %534 = vst [vmem:[%s318 + $0x8] sm:$0xf] %v428
          %535 = vst [vmem:[%s318 + $0x10] sm:$0xf] %v336
          %536 = vst [vmem:[%s318 + $0x18] sm:$0xf] %v338
          %537 = vst [vmem:[%s318 + $0x20] sm:$0xf] %v471
          %538 = vst [vmem:[%s318 + $0x28] sm:$0xf] %v472
          %539 = vst [vmem:[%s318 + $0x30] sm:$0xf] %v493
          %540 = vst [vmem:[%s318 + $0x38] sm:$0xf] %v494
          %541 = vst [vmem:[%s327] sm:$0xf] %v336
          %542 = vst [vmem:[%s327 + $0x8] sm:$0xf] %v338
          %543 = vst [vmem:[%s327 + $0x10] sm:$0xf] %v449
          %544 = vst [vmem:[%s327 + $0x18] sm:$0xf] %v450
          %545 = vst [vmem:[%s327 + $0x20] sm:$0xf] %v493
          %546 = vst [vmem:[%s327 + $0x28] sm:$0xf] %v494
          %547 = vst [vmem:[%s327 + $0x30] sm:$0xf] %v515
          %548 = vst [vmem:[%s327 + $0x38] sm:$0xf] %v516
        $region81: #{trans_conv2d_block_forward.1} parent=72 // pred_fallthru
          _
        %v549 = vld [vmem:[%s295] sm:$0xff]
        %551 = vset.pattern.permute.xlu0 0
        %552 = vperm.xlu0 %551, %v549
        %v553 = vpop.permute.xlu0 %552
        %v555 = vld [vmem:[#allocation2] sm:$0xff]
        %v556 = vld [vmem:[#allocation2 + $0x8] sm:$0xff]
        %v557 = vld [vmem:[#allocation2 + $0x10] sm:$0xff]
        %v558 = vld [vmem:[#allocation2 + $0x18] sm:$0xff]
        %v559 = vld [vmem:[#allocation2 + $0x20] sm:$0xff]
        %v560 = vld [vmem:[#allocation2 + $0x28] sm:$0xff]
        %v561 = vld [vmem:[#allocation2 + $0x30] sm:$0xff]
        %v562 = vld [vmem:[#allocation2 + $0x38] sm:$0xff]
        %v563 = vpack.c.bf16 %v557, %v555
        %v564 = vpack.c.bf16 %v558, %v556
        %v565 = vpack.c.bf16 %v561, %v559
        %v566 = vpack.c.bf16 %v562, %v560
        %v567 = vld [vmem:[%s256] sm:$0xf]
        %vm568 = vcmask 261120
        %v570 = vsel %vm568, %v567, 0
        %572 = vmatprep.subr.bf16.mxu0 %v564
        %573 = vmatpush1.bf16.msra.mxu0 %v563
        %574 = vmatprep.subr.bf16.mxu0 %v566
        %575 = vmatpush1.bf16.msra.mxu0 %v565
        %576 = vmatprep.subr.bf16.mxu0 0
        %577 = vmatpush1.bf16.msra.mxu0 0
        %578 = vmatprep.subr.bf16.mxu0 0
        %579 = vmatpush1.bf16.msra.mxu0 0
        %580 = vmatprep.subr.bf16.mxu0 0
        %581 = vmatpush1.bf16.msra.mxu0 0
        %582 = vmatprep.subr.bf16.mxu0 0
        %583 = vmatpush1.bf16.msra.mxu0 0
        %584 = vmatprep.subr.bf16.mxu0 0
        %585 = vmatpush1.bf16.msra.mxu0 0
        %586 = vmatprep.subr.bf16.mxu0 0
        %587 = vmatpush1.bf16.msra.mxu0 0
        %588 = vmatprep.subr.bf16.mxu0 0
        %589 = vmatpush1.bf16.msra.mxu0 0
        %590 = vmatprep.subr.bf16.mxu0 0
        %591 = vmatpush1.bf16.msra.mxu0 0
        %592 = vmatprep.subr.bf16.mxu0 0
        %593 = vmatpush1.bf16.msra.mxu0 0
        %594 = vmatprep.subr.bf16.mxu0 0
        %595 = vmatpush1.bf16.msra.mxu0 0
        %596 = vmatprep.subr.bf16.mxu0 0
        %597 = vmatpush1.bf16.msra.mxu0 0
        %598 = vmatprep.subr.bf16.mxu0 0
        %599 = vmatpush1.bf16.msra.mxu0 0
        %600 = vmatprep.subr.bf16.mxu0 0
        %601 = vmatpush1.bf16.msra.mxu0 0
        %602 = vmatprep.subr.bf16.mxu0 0
        %603 = vmatpush1.bf16.msra.mxu0 0
        %604 = vmatprep.mubr.bf16.mxu0 0
        %605 = vmatmul.mubr.bf16.gmra.mrb[0].mxu0 %v570
        %v606 = vpop.f32.mrb[0].mxu0
        %v607 = vadd.f32 %v553, %v606
        %v608 = vpop.f32.mrb[0].mxu0
        %v609 = vadd.f32 %v553, %v608
        %v610 = vpop.f32.mrb[0].mxu0
        %v611 = vpop.f32.mrb[0].mxu0
        %612 = vdwg.mxu0
        %v613 = vmax.f32 %v607, 0.0
        %v614 = vmax.f32 %v609, 0.0
        %615 = vst [vmem:[%s286] sm:$0xff] %v613
        %616 = vst [vmem:[%s286 + $0x8] sm:$0xff] %v614
        %s617 = scalar_lea.vmem [#allocation2], 64
        %v618 = vld [vmem:[%s617] sm:$0xff]
        %v619 = vld [vmem:[%s617 + $0x8] sm:$0xff]
        %v620 = vld [vmem:[%s617 + $0x10] sm:$0xff]
        %v621 = vld [vmem:[%s617 + $0x18] sm:$0xff]
        %v622 = vld [vmem:[%s617 + $0x20] sm:$0xff]
        %v623 = vld [vmem:[%s617 + $0x28] sm:$0xff]
        %v624 = vld [vmem:[%s617 + $0x30] sm:$0xff]
        %v625 = vld [vmem:[%s617 + $0x38] sm:$0xff]
        %v626 = vpack.c.bf16 %v620, %v618
        %v627 = vpack.c.bf16 %v621, %v619
        %v628 = vpack.c.bf16 %v624, %v622
        %v629 = vpack.c.bf16 %v625, %v623
        %s630 = scalar_lea.vmem %s256, 4 [#allocation3]
        %v631 = vld [vmem:[%s630] sm:$0xf]
        %v633 = vsel %vm568, %v631, 0
        %635 = vmatprep.subr.bf16.mxu0 %v627
        %636 = vmatpush1.bf16.msra.mxu0 %v626
        %637 = vmatprep.subr.bf16.mxu0 %v629
        %638 = vmatpush1.bf16.msra.mxu0 %v628
        %639 = vmatprep.subr.bf16.mxu0 0
        %640 = vmatpush1.bf16.msra.mxu0 0
        %641 = vmatprep.subr.bf16.mxu0 0
        %642 = vmatpush1.bf16.msra.mxu0 0
        %643 = vmatprep.subr.bf16.mxu0 0
        %644 = vmatpush1.bf16.msra.mxu0 0
        %645 = vmatprep.subr.bf16.mxu0 0
        %646 = vmatpush1.bf16.msra.mxu0 0
        %647 = vmatprep.subr.bf16.mxu0 0
        %648 = vmatpush1.bf16.msra.mxu0 0
        %649 = vmatprep.subr.bf16.mxu0 0
        %650 = vmatpush1.bf16.msra.mxu0 0
        %651 = vmatprep.subr.bf16.mxu0 0
        %652 = vmatpush1.bf16.msra.mxu0 0
        %653 = vmatprep.subr.bf16.mxu0 0
        %654 = vmatpush1.bf16.msra.mxu0 0
        %655 = vmatprep.subr.bf16.mxu0 0
        %656 = vmatpush1.bf16.msra.mxu0 0
        %657 = vmatprep.subr.bf16.mxu0 0
        %658 = vmatpush1.bf16.msra.mxu0 0
        %659 = vmatprep.subr.bf16.mxu0 0
        %660 = vmatpush1.bf16.msra.mxu0 0
        %661 = vmatprep.subr.bf16.mxu0 0
        %662 = vmatpush1.bf16.msra.mxu0 0
        %663 = vmatprep.subr.bf16.mxu0 0
        %664 = vmatpush1.bf16.msra.mxu0 0
        %665 = vmatprep.subr.bf16.mxu0 0
        %666 = vmatpush1.bf16.msra.mxu0 0
        %667 = vmatprep.mubr.bf16.mxu0 0
        %668 = vmatmul.mubr.bf16.gmra.mrb[0].mxu0 %v633
        %v669 = vpop.f32.mrb[0].mxu0
        %v670 = vadd.f32 %v553, %v669
        %v671 = vpop.f32.mrb[0].mxu0
        %v672 = vadd.f32 %v553, %v671
        %v673 = vpop.f32.mrb[0].mxu0
        %v674 = vpop.f32.mrb[0].mxu0
        %675 = vdwg.mxu0
        %v676 = vmax.f32 %v670, 0.0
        %v677 = vmax.f32 %v672, 0.0
        %s678 = scalar_lea.vmem %s286, 16 [#allocation4]
        %679 = vst [vmem:[%s678] sm:$0xff] %v676
        %680 = vst [vmem:[%s678 + $0x8] sm:$0xff] %v677
        %s681 = scalar_lea.vmem [#allocation2], 128
        %v682 = vld [vmem:[%s681] sm:$0xff]
        %v683 = vld [vmem:[%s681 + $0x8] sm:$0xff]
        %v684 = vld [vmem:[%s681 + $0x10] sm:$0xff]
        %v685 = vld [vmem:[%s681 + $0x18] sm:$0xff]
        %v686 = vld [vmem:[%s681 + $0x20] sm:$0xff]
        %v687 = vld [vmem:[%s681 + $0x28] sm:$0xff]
        %v688 = vld [vmem:[%s681 + $0x30] sm:$0xff]
        %v689 = vld [vmem:[%s681 + $0x38] sm:$0xff]
        %v690 = vpack.c.bf16 %v684, %v682
        %v691 = vpack.c.bf16 %v685, %v683
        %v692 = vpack.c.bf16 %v688, %v686
        %v693 = vpack.c.bf16 %v689, %v687
        %s694 = scalar_lea.vmem %s256, 8 [#allocation3]
        %v695 = vld [vmem:[%s694] sm:$0xf]
        %v697 = vsel %vm568, %v695, 0
        %699 = vmatprep.subr.bf16.mxu0 %v691
        %700 = vmatpush1.bf16.msra.mxu0 %v690
        %701 = vmatprep.subr.bf16.mxu0 %v693
        %702 = vmatpush1.bf16.msra.mxu0 %v692
        %703 = vmatprep.subr.bf16.mxu0 0
        %704 = vmatpush1.bf16.msra.mxu0 0
        %705 = vmatprep.subr.bf16.mxu0 0
        %706 = vmatpush1.bf16.msra.mxu0 0
        %707 = vmatprep.subr.bf16.mxu0 0
        %708 = vmatpush1.bf16.msra.mxu0 0
        %709 = vmatprep.subr.bf16.mxu0 0
        %710 = vmatpush1.bf16.msra.mxu0 0
        %711 = vmatprep.subr.bf16.mxu0 0
        %712 = vmatpush1.bf16.msra.mxu0 0
        %713 = vmatprep.subr.bf16.mxu0 0
        %714 = vmatpush1.bf16.msra.mxu0 0
        %715 = vmatprep.subr.bf16.mxu0 0
        %716 = vmatpush1.bf16.msra.mxu0 0
        %717 = vmatprep.subr.bf16.mxu0 0
        %718 = vmatpush1.bf16.msra.mxu0 0
        %719 = vmatprep.subr.bf16.mxu0 0
        %720 = vmatpush1.bf16.msra.mxu0 0
        %721 = vmatprep.subr.bf16.mxu0 0
        %722 = vmatpush1.bf16.msra.mxu0 0
        %723 = vmatprep.subr.bf16.mxu0 0
        %724 = vmatpush1.bf16.msra.mxu0 0
        %725 = vmatprep.subr.bf16.mxu0 0
        %726 = vmatpush1.bf16.msra.mxu0 0
        %727 = vmatprep.subr.bf16.mxu0 0
        %728 = vmatpush1.bf16.msra.mxu0 0
        %729 = vmatprep.subr.bf16.mxu0 0
        %730 = vmatpush1.bf16.msra.mxu0 0
        %731 = vmatprep.mubr.bf16.mxu0 0
        %732 = vmatmul.mubr.bf16.gmra.mrb[0].mxu0 %v697
        %v733 = vpop.f32.mrb[0].mxu0
        %v734 = vadd.f32 %v553, %v733
        %v735 = vpop.f32.mrb[0].mxu0
        %v736 = vadd.f32 %v553, %v735
        %v737 = vpop.f32.mrb[0].mxu0
        %v738 = vpop.f32.mrb[0].mxu0
        %739 = vdwg.mxu0
        %v740 = vmax.f32 %v734, 0.0
        %v741 = vmax.f32 %v736, 0.0
        %s742 = scalar_lea.vmem %s286, 32 [#allocation4]
        %743 = vst [vmem:[%s742] sm:$0xff] %v740
        %744 = vst [vmem:[%s742 + $0x8] sm:$0xff] %v741
        %s745 = scalar_lea.vmem [#allocation2], 192
        %v746 = vld [vmem:[%s745] sm:$0xff]
        %v747 = vld [vmem:[%s745 + $0x8] sm:$0xff]
        %v748 = vld [vmem:[%s745 + $0x10] sm:$0xff]
        %v749 = vld [vmem:[%s745 + $0x18] sm:$0xff]
        %v750 = vld [vmem:[%s745 + $0x20] sm:$0xff]
        %v751 = vld [vmem:[%s745 + $0x28] sm:$0xff]
        %v752 = vld [vmem:[%s745 + $0x30] sm:$0xff]
        %v753 = vld [vmem:[%s745 + $0x38] sm:$0xff]
        %v754 = vpack.c.bf16 %v748, %v746
        %v755 = vpack.c.bf16 %v749, %v747
        %v756 = vpack.c.bf16 %v752, %v750
        %v757 = vpack.c.bf16 %v753, %v751
        %s758 = scalar_lea.vmem %s256, 12 [#allocation3]
        %v759 = vld [vmem:[%s758] sm:$0xf]
        %v761 = vsel %vm568, %v759, 0
        %763 = vmatprep.subr.bf16.mxu0 %v755
        %764 = vmatpush1.bf16.msra.mxu0 %v754
        %765 = vmatprep.subr.bf16.mxu0 %v757
        %766 = vmatpush1.bf16.msra.mxu0 %v756
        %767 = vmatprep.subr.bf16.mxu0 0
        %768 = vmatpush1.bf16.msra.mxu0 0
        %769 = vmatprep.subr.bf16.mxu0 0
        %770 = vmatpush1.bf16.msra.mxu0 0
        %771 = vmatprep.subr.bf16.mxu0 0
        %772 = vmatpush1.bf16.msra.mxu0 0
        %773 = vmatprep.subr.bf16.mxu0 0
        %774 = vmatpush1.bf16.msra.mxu0 0
        %775 = vmatprep.subr.bf16.mxu0 0
        %776 = vmatpush1.bf16.msra.mxu0 0
        %777 = vmatprep.subr.bf16.mxu0 0
        %778 = vmatpush1.bf16.msra.mxu0 0
        %779 = vmatprep.subr.bf16.mxu0 0
        %780 = vmatpush1.bf16.msra.mxu0 0
        %781 = vmatprep.subr.bf16.mxu0 0
        %782 = vmatpush1.bf16.msra.mxu0 0
        %783 = vmatprep.subr.bf16.mxu0 0
        %784 = vmatpush1.bf16.msra.mxu0 0
        %785 = vmatprep.subr.bf16.mxu0 0
        %786 = vmatpush1.bf16.msra.mxu0 0
        %787 = vmatprep.subr.bf16.mxu0 0
        %788 = vmatpush1.bf16.msra.mxu0 0
        %789 = vmatprep.subr.bf16.mxu0 0
        %790 = vmatpush1.bf16.msra.mxu0 0
        %791 = vmatprep.subr.bf16.mxu0 0
        %792 = vmatpush1.bf16.msra.mxu0 0
        %793 = vmatprep.subr.bf16.mxu0 0
        %794 = vmatpush1.bf16.msra.mxu0 0
        %795 = vmatprep.mubr.bf16.mxu0 0
        %796 = vmatmul.mubr.bf16.gmra.mrb[0].mxu0 %v761
        %v797 = vpop.f32.mrb[0].mxu0
        %v798 = vadd.f32 %v553, %v797
        %v799 = vpop.f32.mrb[0].mxu0
        %v800 = vadd.f32 %v553, %v799
        %v801 = vpop.f32.mrb[0].mxu0
        %v802 = vpop.f32.mrb[0].mxu0
        %803 = vdwg.mxu0
        %v804 = vmax.f32 %v798, 0.0
        %v805 = vmax.f32 %v800, 0.0
        %s806 = scalar_lea.vmem %s286, 48 [#allocation4]
        %807 = vst [vmem:[%s806] sm:$0xff] %v804
        %808 = vst [vmem:[%s806 + $0x8] sm:$0xff] %v805
        %s809 = sand.u32 %s136, 1
        %s810 = sand.u32 %s136, 1
        %s811 = smul.addr %s810, 64
        %s812 = scalar_lea.vmem [#allocation4], %s811
        // Predicated region
        $region82: #{trans_conv2d_block_forward.1} parent=72 // pred_check
          %p813 = pneg %p146
        $region83: #{trans_conv2d_block_forward.1} parent=72 // pred_check_branch
          %815 = sbr.rel (%p813) target = $region85
        $region84: #{trans_conv2d_block_forward.1} parent=72 // pred_region
          %s816 = smul.addr %s20, 2
          %s817 = smul.addr %s19, 16
          %s818 = sadd.s32 %s816, %s817
          %s819 = smul.addr %s818, 8
          %s820 = scalar_lea.vmem %s4, %s819
          // Predicated region
          $region86: #{trans_conv2d_block_forward.1} parent=84 // pred_check
            _
          $region87: #{trans_conv2d_block_forward.1} parent=84 // pred_check_branch
            %822 = sbr.rel (0) target = $region89
          $region88: #{trans_conv2d_block_forward.1} parent=84 // pred_region
            // Predicated region
            $region90: #{trans_conv2d_block_forward.1} parent=88 // pred_check
              _
            $region91: #{trans_conv2d_block_forward.1} parent=88 // pred_check_branch
              %824 = sbr.rel (0) target = $region93
            $region92: #{trans_conv2d_block_forward.1} parent=88 // pred_region
              loop: start=0, step=1, limit=1
              $region94: #{trans_conv2d_block_forward.1} parent=92 // loop_pre_header
                _
              $region95: #{trans_conv2d_block_forward.1} parent=92 // loop_header
                %s826 = sphi 0, %s830
                %p827 = scmp.ge.s32.totalorder %s826, 1
                %s831 = sphi %s812, %s812
                %s832 = sphi %s820, %s820
              $region96: #{trans_conv2d_block_forward.1} parent=92 // loop_header_branch
                %829 = sbr.rel (%p827) target = $region100
              $region97: #{trans_conv2d_block_forward.1} parent=92 // loop_body
                %v833 = vld [vmem:[%s831] sm:$0xff]
                %834 = vst [vmem:[%s832] sm:$0xff] %v833
                %v835 = vld [vmem:[%s831 + $0x8] sm:$0xff]
                %836 = vst [vmem:[%s832 + $0x8] sm:$0xff] %v835
                %v837 = vld [vmem:[%s831 + $0x10] sm:$0xff]
                %838 = vst [vmem:[%s832 + $0x20] sm:$0xff] %v837
                %v839 = vld [vmem:[%s831 + $0x18] sm:$0xff]
                %840 = vst [vmem:[%s832 + $0x28] sm:$0xff] %v839
                %v841 = vld [vmem:[%s831 + $0x20] sm:$0xff]
                %842 = vst [vmem:[%s832 + $0x40] sm:$0xff] %v841
                %v843 = vld [vmem:[%s831 + $0x28] sm:$0xff]
                %844 = vst [vmem:[%s832 + $0x48] sm:$0xff] %v843
                %v845 = vld [vmem:[%s831 + $0x30] sm:$0xff]
                %846 = vst [vmem:[%s832 + $0x60] sm:$0xff] %v845
                %v847 = vld [vmem:[%s831 + $0x38] sm:$0xff]
                %848 = vst [vmem:[%s832 + $0x68] sm:$0xff] %v847
              $region98: #{trans_conv2d_block_forward.1} parent=92 // loop_footer
                %s830 = sadd.s32 1, %s826
              $region99: #{trans_conv2d_block_forward.1} parent=92 // loop_footer_branch
                %825 = sbr.rel target = $region95
              $region100: #{trans_conv2d_block_forward.1} parent=92 // loop_exit
                _
            $region93: #{trans_conv2d_block_forward.1} parent=88 // pred_fallthru
              _
            // Predicated region
            $region101: #{trans_conv2d_block_forward.1} parent=88 // pred_check
              _
            $region102: #{trans_conv2d_block_forward.1} parent=88 // pred_check_branch
              %850 = sbr.rel target = $region104
            $region103: #{trans_conv2d_block_forward.1} parent=88 // pred_region
              _
            $region104: #{trans_conv2d_block_forward.1} parent=88 // pred_fallthru
              _
          $region89: #{trans_conv2d_block_forward.1} parent=84 // pred_fallthru
            _
          %851 = vnop
        $region85: #{trans_conv2d_block_forward.1} parent=72 // pred_fallthru
          _
      $region73: #{trans_conv2d_block_forward.1} parent=5 // pred_fallthru
        _
      %p852 = scmp.le.s32.totalorder 2, %s10
      // Predicated region
      $region105: #{trans_conv2d_block_forward.1} parent=5 // pred_check
        %p853 = pneg %p852
      $region106: #{trans_conv2d_block_forward.1} parent=5 // pred_check_branch
        %855 = sbr.rel (%p853) target = $region108
      $region107: #{trans_conv2d_block_forward.1} parent=5 // pred_region
        %s856 = ssub.s32 %s10, 2
        // Predicated region
        $region109: #{trans_conv2d_block_forward.1} parent=107 // pred_check
          %p857 = pneg %p152
        $region110: #{trans_conv2d_block_forward.1} parent=107 // pred_check_branch
          %859 = sbr.rel (%p857) target = $region112
        $region111: #{trans_conv2d_block_forward.1} parent=107 // pred_region
          %s860 = sand.u32 %s137, 1
          %s861 = sand.u32 %s137, 1
          %s862 = smul.addr %s861, 64
          %s863 = scalar_lea.vmem [#allocation4], %s862
        $region112: #{trans_conv2d_block_forward.1} parent=107 // pred_fallthru
          _
      $region108: #{trans_conv2d_block_forward.1} parent=5 // pred_fallthru
        _
    $region6: #{trans_conv2d_block_forward.1} parent=1 // loop_footer
      %s14 = sadd.s32 1, %s10
    $region7: #{trans_conv2d_block_forward.1} parent=1 // loop_footer_branch
      %9 = sbr.rel target = $region3
    $region8: #{trans_conv2d_block_forward.1} parent=1 // loop_exit
      _

</llo_original>
